<compile_context>
chip_gen: v6e
topology: v6e:2x2x1
jax: 0.10.0
libtpu: 0.0.40
codegen_flags: <defaults>
</compile_context>

<pallas_src>
import math
import numpy as np

import jax
import jax.numpy as jnp
from jax import lax
from jax.experimental import pallas as pl
from jax.experimental.pallas import tpu as pltpu

# ----------------------------------------------------------------------------
# Small deterministic hyper-parameters (consistent with BilateralGPTConfig)
# ----------------------------------------------------------------------------
B = 2              # batch
T = 8              # sequence length
C = 32             # n_embd
H = 4              # n_head
HD = C // H        # head_dim = 8
BT = B * T         # flattened rows = 16
C3 = 3 * C         # fused QKV width = 96
THETA = 10000.0    # rope_theta
F32 = jnp.float32


def _mm(a, b):
    return jnp.dot(a, b, preferred_element_type=jnp.float32)


def _mm_t(a, b):  # a @ b.T (contract last dim of both)
    return lax.dot_general(a, b, (((1,), (1,)), ((), ())),
                           preferred_element_type=jnp.float32)


# ----------------------------------------------------------------------------
# Fused MultiHeadSelfAttention kernel: single invocation, whole (B*T, C) slab.
# ----------------------------------------------------------------------------
def mhsa_kernel(x_ref, wqkvT_ref, wpT_ref, cos_ref, sina_ref, sinb_ref, bias_ref,
                o_ref):
    x = x_ref[...]                                           # (BT, C)

    # Fused QKV projection: one (BT,C)@(C,3C) MXU push. 1/sqrt(HD) is folded into
    # the Q band of the weight at prep time.
    qkv = _mm(x, wqkvT_ref[...])                             # (BT, 3C)

    # RoPE on the fused buffer.  For interleaved pairs:
    #   y[2m]   = x[2m]*cos - x[2m+1]*sin
    #   y[2m+1] = x[2m+1]*cos + x[2m]*sin
    # sina carries (-sin) on even lanes (0 elsewhere), sinb carries (+sin) on odd
    # lanes; both are 0 over the V band (cos=1 there), so V passes through.
    up = pltpu.roll(qkv, C3 - 1, 1)                          # up[:, j] = qkv[:, j+1]
    dn = pltpu.roll(qkv, 1, 1)                               # dn[:, j] = qkv[:, j-1]
    qkv = qkv * cos_ref[...] + up * sina_ref[...] + dn * sinb_ref[...]

    bias = bias_ref[...]                                     # (BT, BT) block-causal additive
    wpT = wpT_ref[...]                                       # (C, C)

    # Statically-unrolled per-head attention over the stacked batches.  The additive
    # bias kills cross-batch scores, so each (T,T) attention stays within its batch.
    acc = jnp.zeros((BT, C), jnp.float32)
    for h in range(H):
        q_h = qkv[:, h * HD:(h + 1) * HD]                    # (BT, HD)
        k_h = qkv[:, C + h * HD:C + (h + 1) * HD]
        v_h = qkv[:, 2 * C + h * HD:2 * C + (h + 1) * HD]

        s = _mm_t(q_h, k_h) + bias                           # (BT, BT)
        m = jnp.max(s, axis=-1, keepdims=True)
        p = jnp.exp(s - m)
        denom = jnp.sum(p, axis=-1, keepdims=True)
        p = p * pl.reciprocal(denom, approx=False)           # divide on the EUP slot
        o_h = _mm(p, v_h)                                    # (BT, HD)

        # Per-head output projection, accumulated in registers (no lane concatenate).
        acc = acc + _mm(o_h, wpT[h * HD:(h + 1) * HD, :])    # (BT, C)

    o_ref[...] = acc
    # TODO(synk): output last dim is 32 (<128 lanes) so the final store is masked; at this
    # toy width a lane-dense layout would cost more in reshuffles than it saves.


def multi_head_self_attention(x, prepped):
    """x: (B, T, C) float32 -> (B, T, C) float32."""
    x_flat = x.reshape(BT, C)

    flops = (2 * BT * C * C3                                   # fused QKV
             + H * (2 * BT * BT * HD                           # scores
                    + 2 * BT * BT * HD                         # attn @ V
                    + 2 * BT * HD * C))                        # per-head projection
    bytes_accessed = 4 * (BT * C                               # x
                          + C * C3 + C * C                     # fused QKV weight + proj weight
                          + 3 * BT * C3                        # cos / sin_a / sin_b
                          + BT * BT                            # additive bias
                          + BT * C)                            # output
    ce = pl.CostEstimate(flops=flops,
                         transcendentals=H * BT * BT,
                         bytes_accessed=bytes_accessed)

    out_flat = pl.pallas_call(
        mhsa_kernel,
        out_shape=jax.ShapeDtypeStruct((BT, C), F32),
        cost_estimate=ce,
    )(x_flat, prepped["wqkvT"], prepped["wpT"],
      prepped["cos"], prepped["sin_a"], prepped["sin_b"], prepped["bias"])

    return out_flat.reshape(B, T, C)


# ----------------------------------------------------------------------------
# Deterministic parameters + host-side prep (fused weights, scale fold, RoPE/bias tables)
# ----------------------------------------------------------------------------
def make_raw_params(key):
    ks = jax.random.split(key, 4)
    scale = 1.0 / math.sqrt(C)
    wq = (scale * jax.random.normal(ks[0], (C, C), dtype=F32)).astype(F32)  # nn.Linear (out,in)
    wk = (scale * jax.random.normal(ks[1], (C, C), dtype=F32)).astype(F32)
    wv = (scale * jax.random.normal(ks[2], (C, C), dtype=F32)).astype(F32)
    wp = (scale * jax.random.normal(ks[3], (C, C), dtype=F32)).astype(F32)
    return dict(wq=wq, wk=wk, wv=wv, wp=wp)


def make_rope_angles():
    half = HD // 2
    freqs = 1.0 / (THETA ** (np.arange(0, HD, 2)[:half].astype(np.float32) / HD))
    t = np.arange(T, dtype=np.float32)
    return np.outer(t, freqs).astype(np.float32)                 # (T, HD//2)


def prep_params(raw):
    ang = make_rope_angles()
    cos_i = np.repeat(np.cos(ang), 2, axis=1)                    # (T, HD) interleaved
    sin_i = np.repeat(np.sin(ang), 2, axis=1)
    sign = np.tile(np.array([-1.0, 1.0], np.float32), HD // 2)
    sin_signed = sin_i * sign                                    # -sin on even, +sin on odd lanes

    cos_qk = np.tile(cos_i, (1, H)).astype(np.float32)           # (T, C), same per head
    sin_qk = np.tile(sin_signed, (1, H)).astype(np.float32)

    cos_full = np.concatenate([cos_qk, cos_qk, np.ones((T, C), np.float32)], axis=1)   # (T, 3C)
    sin_full = np.concatenate([sin_qk, sin_qk, np.zeros((T, C), np.float32)], axis=1)

    lane = np.arange(C3)
    sin_a = (sin_full * (lane % 2 == 0)).astype(np.float32)      # even lanes: -sin
    sin_b = (sin_full * (lane % 2 == 1)).astype(np.float32)      # odd lanes:  +sin

    cos_bt = np.tile(cos_full, (B, 1)).astype(np.float32)        # (BT, 3C)
    sin_a_bt = np.tile(sin_a, (B, 1)).astype(np.float32)
    sin_b_bt = np.tile(sin_b, (B, 1)).astype(np.float32)

    # Block-causal additive bias over the stacked batches: allow only same-batch, causal.
    r = np.arange(BT)
    allowed = (r[:, None] // T == r[None, :] // T) & (r[None, :] <= r[:, None])
    bias = np.where(allowed, 0.0, -1e30).astype(np.float32)      # (BT, BT)

    wq = np.asarray(raw["wq"]); wk = np.asarray(raw["wk"])
    wv = np.asarray(raw["wv"]); wp = np.asarray(raw["wp"])
    wqkvT = np.concatenate([wq.T / math.sqrt(HD),                # fold 1/sqrt(head_dim) into Q
                            wk.T, wv.T], axis=1).astype(np.float32)   # (C, 3C)

    return dict(
        wqkvT=jnp.asarray(wqkvT),
        wpT=jnp.asarray(wp.T.astype(np.float32)),
        cos=jnp.asarray(cos_bt),
        sin_a=jnp.asarray(sin_a_bt),
        sin_b=jnp.asarray(sin_b_bt),
        bias=jnp.asarray(bias),
    )


# ----------------------------------------------------------------------------
# Pure-JAX reference (mirrors the PyTorch module exactly)
# ----------------------------------------------------------------------------
def mhsa_reference(x, raw):
    ang = jnp.asarray(make_rope_angles())                        # (T, HD//2)
    q = x @ raw["wq"].T
    k = x @ raw["wk"].T
    v = x @ raw["wv"].T

    def rope(z):
        zr = z.reshape(B, T, H, HD // 2, 2)
        z0, z1 = zr[..., 0], zr[..., 1]
        c = jnp.cos(ang)[None, :, None, :]
        s = jnp.sin(ang)[None, :, None, :]
        return jnp.stack([z0 * c - z1 * s, z0 * s + z1 * c], axis=-1).reshape(B, T, C)

    q, k = rope(q), rope(k)
    qh = q.reshape(B, T, H, HD).transpose(0, 2, 1, 3)
    kh = k.reshape(B, T, H, HD).transpose(0, 2, 1, 3)
    vh = v.reshape(B, T, H, HD).transpose(0, 2, 1, 3)
    s = jnp.einsum('bhqd,bhkd->bhqk', qh, kh) / math.sqrt(HD)
    mask = jnp.asarray(np.tril(np.ones((T, T), bool)))
    s = jnp.where(mask, s, -jnp.inf)
    p = jax.nn.softmax(s, axis=-1)
    o = jnp.einsum('bhqk,bhkd->bhqd', p, vh)
    o = o.transpose(0, 2, 1, 3).reshape(B, T, C)
    return o @ raw["wp"].T


# ----------------------------------------------------------------------------
if __name__ == "__main__":
    key = jax.random.PRNGKey(0)
    kp, kx = jax.random.split(key)

    raw = make_raw_params(kp)
    prepped = prep_params(raw)

    x = jax.random.normal(kx, (B, T, C), dtype=F32)

    y = multi_head_self_attention(x, prepped)
    jax.block_until_ready(y)

    y_ref = mhsa_reference(x, raw)
    jax.block_until_ready(y_ref)

    assert y.shape == (B, T, C)
    assert bool(jnp.all(jnp.isfinite(y)))
    np.testing.assert_allclose(np.asarray(y), np.asarray(y_ref), rtol=1e-4, atol=1e-4)
    print("KERNEL_OK")
</pallas_src>

<mosaic_0001>
module attributes {stable_mosaic.version = 11 : i64} {
  func.func @mhsa_kernel(%arg0: memref<16x32xf32, #tpu.memory_space<vmem>>, %arg1: memref<32x96xf32, #tpu.memory_space<vmem>>, %arg2: memref<32x32xf32, #tpu.memory_space<vmem>>, %arg3: memref<16x96xf32, #tpu.memory_space<vmem>>, %arg4: memref<16x96xf32, #tpu.memory_space<vmem>>, %arg5: memref<16x96xf32, #tpu.memory_space<vmem>>, %arg6: memref<16x16xf32, #tpu.memory_space<vmem>>, %arg7: memref<16x32xf32, #tpu.memory_space<vmem>>) attributes {dimension_semantics = [], scalar_prefetch = 0 : i64, scratch_operands = 0 : i64, tpu.core_type = #tpu.core_type<tc>} {
    %c0 = arith.constant 0 : index
    %c0_0 = arith.constant 0 : index
    %0 = vector.load %arg0[%c0, %c0_0] : memref<16x32xf32, #tpu.memory_space<vmem>>, vector<16x32xf32>
    %c0_1 = arith.constant 0 : index
    %c0_2 = arith.constant 0 : index
    %1 = vector.load %arg1[%c0_1, %c0_2] : memref<32x96xf32, #tpu.memory_space<vmem>>, vector<32x96xf32>
    %cst = arith.constant dense<0.000000e+00> : vector<16x96xf32>
    %2 = tpu.matmul %0, %1, %cst {dimension_numbers = #tpu.dot_dimension_numbers<[1], [0], [0], [1], [0, 0, 1, 1], [], []>} : vector<16x32xf32>, vector<32x96xf32>, vector<16x96xf32> -> vector<16x96xf32>
    %c95_i32 = arith.constant 95 : i32
    %3 = tpu.dynamic_rotate %2 by %c95_i32 dim 1 : vector<16x96xf32>, i32 -> vector<16x96xf32>
    %c1_i32 = arith.constant 1 : i32
    %4 = tpu.dynamic_rotate %2 by %c1_i32 dim 1 : vector<16x96xf32>, i32 -> vector<16x96xf32>
    %c0_3 = arith.constant 0 : index
    %c0_4 = arith.constant 0 : index
    %5 = vector.load %arg3[%c0_3, %c0_4] : memref<16x96xf32, #tpu.memory_space<vmem>>, vector<16x96xf32>
    %6 = arith.mulf %2, %5 : vector<16x96xf32>
    %c0_5 = arith.constant 0 : index
    %c0_6 = arith.constant 0 : index
    %7 = vector.load %arg4[%c0_5, %c0_6] : memref<16x96xf32, #tpu.memory_space<vmem>>, vector<16x96xf32>
    %8 = arith.mulf %3, %7 : vector<16x96xf32>
    %9 = arith.addf %6, %8 : vector<16x96xf32>
    %c0_7 = arith.constant 0 : index
    %c0_8 = arith.constant 0 : index
    %10 = vector.load %arg5[%c0_7, %c0_8] : memref<16x96xf32, #tpu.memory_space<vmem>>, vector<16x96xf32>
    %11 = arith.mulf %4, %10 : vector<16x96xf32>
    %12 = arith.addf %9, %11 : vector<16x96xf32>
    %c0_9 = arith.constant 0 : index
    %c0_10 = arith.constant 0 : index
    %13 = vector.load %arg6[%c0_9, %c0_10] : memref<16x16xf32, #tpu.memory_space<vmem>>, vector<16x16xf32>
    %c0_11 = arith.constant 0 : index
    %c0_12 = arith.constant 0 : index
    %14 = vector.load %arg2[%c0_11, %c0_12] : memref<32x32xf32, #tpu.memory_space<vmem>>, vector<32x32xf32>
    %cst_13 = arith.constant 0.000000e+00 : f32
    %15 = vector.broadcast %cst_13 : f32 to vector<16x32xf32>
    %16 = vector.extract_strided_slice %12 {offsets = [0, 0], sizes = [16, 8], strides = [1, 1]} : vector<16x96xf32> to vector<16x8xf32>
    %17 = vector.extract_strided_slice %12 {offsets = [0, 32], sizes = [16, 8], strides = [1, 1]} : vector<16x96xf32> to vector<16x8xf32>
    %18 = vector.extract_strided_slice %12 {offsets = [0, 64], sizes = [16, 8], strides = [1, 1]} : vector<16x96xf32> to vector<16x8xf32>
    %cst_14 = arith.constant dense<0.000000e+00> : vector<16x16xf32>
    %19 = tpu.matmul %16, %17, %cst_14 {dimension_numbers = #tpu.dot_dimension_numbers<[1], [1], [0], [0], [0, 0, 1, 0], [], []>} : vector<16x8xf32>, vector<16x8xf32>, vector<16x16xf32> -> vector<16x16xf32>
    %20 = arith.addf %19, %13 : vector<16x16xf32>
    %cst_15 = arith.constant dense<0xFF800000> : vector<16xf32>
    %21 = vector.multi_reduction <maximumf>, %20, %cst_15 [1] : vector<16x16xf32> to vector<16xf32>
    %22 = vector.shape_cast %21 : vector<16xf32> to vector<16x1xf32>
    %23 = vector.broadcast %22 : vector<16x1xf32> to vector<16x16xf32>
    %24 = arith.subf %20, %23 : vector<16x16xf32>
    %25 = math.exp %24 : vector<16x16xf32>
    %cst_16 = arith.constant dense<0.000000e+00> : vector<16xf32>
    %26 = vector.multi_reduction <add>, %25, %cst_16 [1] : vector<16x16xf32> to vector<16xf32>
    %27 = vector.shape_cast %26 : vector<16xf32> to vector<16x1xf32>
    %28 = tpu.reciprocal %27 : vector<16x1xf32> -> vector<16x1xf32>
    %29 = vector.broadcast %28 : vector<16x1xf32> to vector<16x16xf32>
    %30 = arith.mulf %25, %29 : vector<16x16xf32>
    %cst_17 = arith.constant dense<0.000000e+00> : vector<16x8xf32>
    %31 = tpu.matmul %30, %18, %cst_17 {dimension_numbers = #tpu.dot_dimension_numbers<[1], [0], [0], [1], [0, 0, 1, 1], [], []>} : vector<16x16xf32>, vector<16x8xf32>, vector<16x8xf32> -> vector<16x8xf32>
    %32 = vector.extract_strided_slice %14 {offsets = [0, 0], sizes = [8, 32], strides = [1, 1]} : vector<32x32xf32> to vector<8x32xf32>
    %cst_18 = arith.constant dense<0.000000e+00> : vector<16x32xf32>
    %33 = tpu.matmul %31, %32, %cst_18 {dimension_numbers = #tpu.dot_dimension_numbers<[1], [0], [0], [1], [0, 0, 1, 1], [], []>} : vector<16x8xf32>, vector<8x32xf32>, vector<16x32xf32> -> vector<16x32xf32>
    %34 = arith.addf %15, %33 : vector<16x32xf32>
    %35 = vector.extract_strided_slice %12 {offsets = [0, 8], sizes = [16, 8], strides = [1, 1]} : vector<16x96xf32> to vector<16x8xf32>
    %36 = vector.extract_strided_slice %12 {offsets = [0, 40], sizes = [16, 8], strides = [1, 1]} : vector<16x96xf32> to vector<16x8xf32>
    %37 = vector.extract_strided_slice %12 {offsets = [0, 72], sizes = [16, 8], strides = [1, 1]} : vector<16x96xf32> to vector<16x8xf32>
    %cst_19 = arith.constant dense<0.000000e+00> : vector<16x16xf32>
    %38 = tpu.matmul %35, %36, %cst_19 {dimension_numbers = #tpu.dot_dimension_numbers<[1], [1], [0], [0], [0, 0, 1, 0], [], []>} : vector<16x8xf32>, vector<16x8xf32>, vector<16x16xf32> -> vector<16x16xf32>
    %39 = arith.addf %38, %13 : vector<16x16xf32>
    %cst_20 = arith.constant dense<0xFF800000> : vector<16xf32>
    %40 = vector.multi_reduction <maximumf>, %39, %cst_20 [1] : vector<16x16xf32> to vector<16xf32>
    %41 = vector.shape_cast %40 : vector<16xf32> to vector<16x1xf32>
    %42 = vector.broadcast %41 : vector<16x1xf32> to vector<16x16xf32>
    %43 = arith.subf %39, %42 : vector<16x16xf32>
    %44 = math.exp %43 : vector<16x16xf32>
    %cst_21 = arith.constant dense<0.000000e+00> : vector<16xf32>
    %45 = vector.multi_reduction <add>, %44, %cst_21 [1] : vector<16x16xf32> to vector<16xf32>
    %46 = vector.shape_cast %45 : vector<16xf32> to vector<16x1xf32>
    %47 = tpu.reciprocal %46 : vector<16x1xf32> -> vector<16x1xf32>
    %48 = vector.broadcast %47 : vector<16x1xf32> to vector<16x16xf32>
    %49 = arith.mulf %44, %48 : vector<16x16xf32>
    %cst_22 = arith.constant dense<0.000000e+00> : vector<16x8xf32>
    %50 = tpu.matmul %49, %37, %cst_22 {dimension_numbers = #tpu.dot_dimension_numbers<[1], [0], [0], [1], [0, 0, 1, 1], [], []>} : vector<16x16xf32>, vector<16x8xf32>, vector<16x8xf32> -> vector<16x8xf32>
    %51 = vector.extract_strided_slice %14 {offsets = [8, 0], sizes = [8, 32], strides = [1, 1]} : vector<32x32xf32> to vector<8x32xf32>
    %cst_23 = arith.constant dense<0.000000e+00> : vector<16x32xf32>
    %52 = tpu.matmul %50, %51, %cst_23 {dimension_numbers = #tpu.dot_dimension_numbers<[1], [0], [0], [1], [0, 0, 1, 1], [], []>} : vector<16x8xf32>, vector<8x32xf32>, vector<16x32xf32> -> vector<16x32xf32>
    %53 = arith.addf %34, %52 : vector<16x32xf32>
    %54 = vector.extract_strided_slice %12 {offsets = [0, 16], sizes = [16, 8], strides = [1, 1]} : vector<16x96xf32> to vector<16x8xf32>
    %55 = vector.extract_strided_slice %12 {offsets = [0, 48], sizes = [16, 8], strides = [1, 1]} : vector<16x96xf32> to vector<16x8xf32>
    %56 = vector.extract_strided_slice %12 {offsets = [0, 80], sizes = [16, 8], strides = [1, 1]} : vector<16x96xf32> to vector<16x8xf32>
    %cst_24 = arith.constant dense<0.000000e+00> : vector<16x16xf32>
    %57 = tpu.matmul %54, %55, %cst_24 {dimension_numbers = #tpu.dot_dimension_numbers<[1], [1], [0], [0], [0, 0, 1, 0], [], []>} : vector<16x8xf32>, vector<16x8xf32>, vector<16x16xf32> -> vector<16x16xf32>
    %58 = arith.addf %57, %13 : vector<16x16xf32>
    %cst_25 = arith.constant dense<0xFF800000> : vector<16xf32>
    %59 = vector.multi_reduction <maximumf>, %58, %cst_25 [1] : vector<16x16xf32> to vector<16xf32>
    %60 = vector.shape_cast %59 : vector<16xf32> to vector<16x1xf32>
    %61 = vector.broadcast %60 : vector<16x1xf32> to vector<16x16xf32>
    %62 = arith.subf %58, %61 : vector<16x16xf32>
    %63 = math.exp %62 : vector<16x16xf32>
    %cst_26 = arith.constant dense<0.000000e+00> : vector<16xf32>
    %64 = vector.multi_reduction <add>, %63, %cst_26 [1] : vector<16x16xf32> to vector<16xf32>
    %65 = vector.shape_cast %64 : vector<16xf32> to vector<16x1xf32>
    %66 = tpu.reciprocal %65 : vector<16x1xf32> -> vector<16x1xf32>
    %67 = vector.broadcast %66 : vector<16x1xf32> to vector<16x16xf32>
    %68 = arith.mulf %63, %67 : vector<16x16xf32>
    %cst_27 = arith.constant dense<0.000000e+00> : vector<16x8xf32>
    %69 = tpu.matmul %68, %56, %cst_27 {dimension_numbers = #tpu.dot_dimension_numbers<[1], [0], [0], [1], [0, 0, 1, 1], [], []>} : vector<16x16xf32>, vector<16x8xf32>, vector<16x8xf32> -> vector<16x8xf32>
    %70 = vector.extract_strided_slice %14 {offsets = [16, 0], sizes = [8, 32], strides = [1, 1]} : vector<32x32xf32> to vector<8x32xf32>
    %cst_28 = arith.constant dense<0.000000e+00> : vector<16x32xf32>
    %71 = tpu.matmul %69, %70, %cst_28 {dimension_numbers = #tpu.dot_dimension_numbers<[1], [0], [0], [1], [0, 0, 1, 1], [], []>} : vector<16x8xf32>, vector<8x32xf32>, vector<16x32xf32> -> vector<16x32xf32>
    %72 = arith.addf %53, %71 : vector<16x32xf32>
    %73 = vector.extract_strided_slice %12 {offsets = [0, 24], sizes = [16, 8], strides = [1, 1]} : vector<16x96xf32> to vector<16x8xf32>
    %74 = vector.extract_strided_slice %12 {offsets = [0, 56], sizes = [16, 8], strides = [1, 1]} : vector<16x96xf32> to vector<16x8xf32>
    %75 = vector.extract_strided_slice %12 {offsets = [0, 88], sizes = [16, 8], strides = [1, 1]} : vector<16x96xf32> to vector<16x8xf32>
    %cst_29 = arith.constant dense<0.000000e+00> : vector<16x16xf32>
    %76 = tpu.matmul %73, %74, %cst_29 {dimension_numbers = #tpu.dot_dimension_numbers<[1], [1], [0], [0], [0, 0, 1, 0], [], []>} : vector<16x8xf32>, vector<16x8xf32>, vector<16x16xf32> -> vector<16x16xf32>
    %77 = arith.addf %76, %13 : vector<16x16xf32>
    %cst_30 = arith.constant dense<0xFF800000> : vector<16xf32>
    %78 = vector.multi_reduction <maximumf>, %77, %cst_30 [1] : vector<16x16xf32> to vector<16xf32>
    %79 = vector.shape_cast %78 : vector<16xf32> to vector<16x1xf32>
    %80 = vector.broadcast %79 : vector<16x1xf32> to vector<16x16xf32>
    %81 = arith.subf %77, %80 : vector<16x16xf32>
    %82 = math.exp %81 : vector<16x16xf32>
    %cst_31 = arith.constant dense<0.000000e+00> : vector<16xf32>
    %83 = vector.multi_reduction <add>, %82, %cst_31 [1] : vector<16x16xf32> to vector<16xf32>
    %84 = vector.shape_cast %83 : vector<16xf32> to vector<16x1xf32>
    %85 = tpu.reciprocal %84 : vector<16x1xf32> -> vector<16x1xf32>
    %86 = vector.broadcast %85 : vector<16x1xf32> to vector<16x16xf32>
    %87 = arith.mulf %82, %86 : vector<16x16xf32>
    %cst_32 = arith.constant dense<0.000000e+00> : vector<16x8xf32>
    %88 = tpu.matmul %87, %75, %cst_32 {dimension_numbers = #tpu.dot_dimension_numbers<[1], [0], [0], [1], [0, 0, 1, 1], [], []>} : vector<16x16xf32>, vector<16x8xf32>, vector<16x8xf32> -> vector<16x8xf32>
    %89 = vector.extract_strided_slice %14 {offsets = [24, 0], sizes = [8, 32], strides = [1, 1]} : vector<32x32xf32> to vector<8x32xf32>
    %cst_33 = arith.constant dense<0.000000e+00> : vector<16x32xf32>
    %90 = tpu.matmul %88, %89, %cst_33 {dimension_numbers = #tpu.dot_dimension_numbers<[1], [0], [0], [1], [0, 0, 1, 1], [], []>} : vector<16x8xf32>, vector<8x32xf32>, vector<16x32xf32> -> vector<16x32xf32>
    %91 = arith.addf %72, %90 : vector<16x32xf32>
    %c0_34 = arith.constant 0 : index
    %c0_35 = arith.constant 0 : index
    %92 = vector.load %arg7[%c0_34, %c0_35] : memref<16x32xf32, #tpu.memory_space<vmem>>, vector<16x32xf32>
    tpu.vector_store %arg7[%c0_34, %c0_35], %91 {strides = array<i32>} : memref<16x32xf32, #tpu.memory_space<vmem>>, vector<16x32xf32>,
    return
  }
}

</mosaic_0001>

<llo_original>
// kernel: tpu_custom_call.1
$region0: #{tpu_custom_call.1}
  #allocation0 [shape = 'u32[]', space=smem, size = 0x4, offset = 0x4, fixed_abs, tag = 'smem constant byte address 0x4 - core index']
  #allocation1 [shape = 'u32[144,128]{1,0:T(1,128)}', space=vmem, size = 0x12000, scoped, tag = 'internal scratch']
  %s0 = inlined_call_operand.hbm [shape: f32[16,32], index: 0, kind: input, shape index: {}]
  %s1 = inlined_call_operand.hbm [shape: f32[32,96], index: 1, kind: input, shape index: {}]
  %s2 = inlined_call_operand.hbm [shape: f32[32,32], index: 2, kind: input, shape index: {}]
  %s3 = inlined_call_operand.hbm [shape: f32[16,96], index: 3, kind: input, shape index: {}]
  %s4 = inlined_call_operand.hbm [shape: f32[16,96], index: 4, kind: input, shape index: {}]
  %s5 = inlined_call_operand.hbm [shape: f32[16,96], index: 5, kind: input, shape index: {}]
  %s6 = inlined_call_operand.hbm [shape: f32[16,16], index: 6, kind: input, shape index: {}]
  %s7 = inlined_call_operand.hbm [shape: f32[16,32], index: 7, kind: output, shape index: {}]
  %s8 = sld [smem:[#allocation0]]
  $region66: #{tpu_custom_call.1} parent=0
    _
  %s10 = ssub.s32 1, %s8
  %s11 = scalar_select 0, %s10, %s8
  $region1: #{tpu_custom_call.1} parent=0
    #allocation2 [shape = 'u8[8192]{0}', space=vmem, size = 0x2000, scoped, tag = 'input window, operand 0, single buffered']
    #allocation3 [shape = 's32[1]{0}', space=sflag, size = 0x4, scoped, tag = 'scoped memory for tpu_custom_call.1']
    #allocation4 [shape = 's32[1]{0}', space=sflag, size = 0x4, scoped, tag = 'scoped memory for tpu_custom_call.1']
    #allocation5 [shape = 'u8[16384]{0}', space=vmem, size = 0x4000, scoped, tag = 'input window, operand 1, single buffered']
    #allocation6 [shape = 's32[1]{0}', space=sflag, size = 0x4, scoped, tag = 'scoped memory for tpu_custom_call.1']
    #allocation7 [shape = 'u8[16384]{0}', space=vmem, size = 0x4000, scoped, tag = 'input window, operand 2, single buffered']
    #allocation8 [shape = 'u8[8192]{0}', space=vmem, size = 0x2000, scoped, tag = 'input window, operand 3, single buffered']
    #allocation9 [shape = 's32[1]{0}', space=sflag, size = 0x4, scoped, tag = 'scoped memory for tpu_custom_call.1']
    #allocation10 [shape = 'u8[8192]{0}', space=vmem, size = 0x2000, scoped, tag = 'input window, operand 4, single buffered']
    #allocation11 [shape = 'u8[8192]{0}', space=vmem, size = 0x2000, scoped, tag = 'input window, operand 5, single buffered']
    #allocation12 [shape = 's32[1]{0}', space=sflag, size = 0x4, scoped, tag = 'scoped memory for tpu_custom_call.1']
    #allocation13 [shape = 'u8[8192]{0}', space=vmem, size = 0x2000, scoped, tag = 'input window, operand 6, single buffered']
    #allocation14 [shape = 'u8[8192]{0}', space=vmem, size = 0x2000, scoped, tag = 'output window, operand 0, single buffered']
    %12 = vsyncpa [#allocation3], 0
    %13 = vsyncpa [#allocation6], 0
    %14 = vsyncpa [#allocation9], 0
    %15 = vsyncpa [#allocation12], 0
    %16 = vsyncpa [#allocation4], 0
    // Predicated region
    $region2: #{tpu_custom_call.1} parent=1 // pred_check
      _
    $region3: #{tpu_custom_call.1} parent=1 // pred_check_branch
      %18 = sbr.rel (0) target = $region5
    $region4: #{tpu_custom_call.1} parent=1 // pred_region
      %s20 = ssub.s32 256, 256
      %21 = vsyncadd [#allocation3], %s20
      %s22 = sshll.u32 [#allocation2], 4
      %s23 = int_to_ptr.vmem [resolvable:$true] %s22
      %28 = dma.hbm_to_vmem [thread:$0]  %s0, 256, %s23, [#allocation3], 128, 128, 8
    $region5: #{tpu_custom_call.1} parent=1 // pred_fallthru
      _
    // Predicated region
    $region6: #{tpu_custom_call.1} parent=1 // pred_check
      _
    $region7: #{tpu_custom_call.1} parent=1 // pred_check_branch
      %30 = sbr.rel (0) target = $region9
    $region8: #{tpu_custom_call.1} parent=1 // pred_region
      %s32 = ssub.s32 512, 512
      %33 = vsyncadd [#allocation6], %s32
      %s34 = sshll.u32 [#allocation5], 4
      %s35 = int_to_ptr.vmem [resolvable:$true] %s34
      %40 = dma.hbm_to_vmem [thread:$0]  %s1, 512, %s35, [#allocation6], 128, 128, 8
    $region9: #{tpu_custom_call.1} parent=1 // pred_fallthru
      _
    // Predicated region
    $region10: #{tpu_custom_call.1} parent=1 // pred_check
      _
    $region11: #{tpu_custom_call.1} parent=1 // pred_check_branch
      %42 = sbr.rel (0) target = $region13
    $region12: #{tpu_custom_call.1} parent=1 // pred_region
      %s44 = ssub.s32 512, 512
      %45 = vsyncadd [#allocation6], %s44
      %s46 = sshll.u32 [#allocation7], 4
      %s47 = int_to_ptr.vmem [resolvable:$true] %s46
      %52 = dma.hbm_to_vmem [thread:$0]  %s2, 512, %s47, [#allocation6], 128, 128, 8
    $region13: #{tpu_custom_call.1} parent=1 // pred_fallthru
      _
    // Predicated region
    $region14: #{tpu_custom_call.1} parent=1 // pred_check
      _
    $region15: #{tpu_custom_call.1} parent=1 // pred_check_branch
      %54 = sbr.rel (0) target = $region17
    $region16: #{tpu_custom_call.1} parent=1 // pred_region
      %s56 = ssub.s32 256, 256
      %57 = vsyncadd [#allocation9], %s56
      %s58 = sshll.u32 [#allocation8], 4
      %s59 = int_to_ptr.vmem [resolvable:$true] %s58
      %64 = dma.hbm_to_vmem [thread:$0]  %s3, 256, %s59, [#allocation9], 128, 128, 8
    $region17: #{tpu_custom_call.1} parent=1 // pred_fallthru
      _
    // Predicated region
    $region18: #{tpu_custom_call.1} parent=1 // pred_check
      _
    $region19: #{tpu_custom_call.1} parent=1 // pred_check_branch
      %66 = sbr.rel (0) target = $region21
    $region20: #{tpu_custom_call.1} parent=1 // pred_region
      %s68 = ssub.s32 256, 256
      %69 = vsyncadd [#allocation9], %s68
      %s70 = sshll.u32 [#allocation10], 4
      %s71 = int_to_ptr.vmem [resolvable:$true] %s70
      %76 = dma.hbm_to_vmem [thread:$0]  %s4, 256, %s71, [#allocation9], 128, 128, 8
    $region21: #{tpu_custom_call.1} parent=1 // pred_fallthru
      _
    // Predicated region
    $region22: #{tpu_custom_call.1} parent=1 // pred_check
      _
    $region23: #{tpu_custom_call.1} parent=1 // pred_check_branch
      %78 = sbr.rel (0) target = $region25
    $region24: #{tpu_custom_call.1} parent=1 // pred_region
      %s80 = ssub.s32 256, 256
      %81 = vsyncadd [#allocation12], %s80
      %s82 = sshll.u32 [#allocation11], 4
      %s83 = int_to_ptr.vmem [resolvable:$true] %s82
      %88 = dma.hbm_to_vmem [thread:$0]  %s5, 256, %s83, [#allocation12], 128, 128, 8
    $region25: #{tpu_custom_call.1} parent=1 // pred_fallthru
      _
    // Predicated region
    $region26: #{tpu_custom_call.1} parent=1 // pred_check
      _
    $region27: #{tpu_custom_call.1} parent=1 // pred_check_branch
      %90 = sbr.rel (0) target = $region29
    $region28: #{tpu_custom_call.1} parent=1 // pred_region
      %s92 = ssub.s32 256, 256
      %93 = vsyncadd [#allocation12], %s92
      %s94 = sshll.u32 [#allocation13], 4
      %s95 = int_to_ptr.vmem [resolvable:$true] %s94
      %100 = dma.hbm_to_vmem [thread:$0]  %s6, 256, %s95, [#allocation12], 128, 128, 8
    $region29: #{tpu_custom_call.1} parent=1 // pred_fallthru
      _
    // Predicated region
    $region30: #{tpu_custom_call.1} parent=1 // pred_check
      _
    $region31: #{tpu_custom_call.1} parent=1 // pred_check_branch
      %102 = sbr.rel (0) target = $region33
    $region32: #{tpu_custom_call.1} parent=1 // pred_region
      %103 = dma.done [#allocation3], 256
    $region33: #{tpu_custom_call.1} parent=1 // pred_fallthru
      _
    // Predicated region
    $region34: #{tpu_custom_call.1} parent=1 // pred_check
      _
    $region35: #{tpu_custom_call.1} parent=1 // pred_check_branch
      %105 = sbr.rel (0) target = $region37
    $region36: #{tpu_custom_call.1} parent=1 // pred_region
      %106 = dma.done [#allocation6], 512
    $region37: #{tpu_custom_call.1} parent=1 // pred_fallthru
      _
    // Predicated region
    $region38: #{tpu_custom_call.1} parent=1 // pred_check
      _
    $region39: #{tpu_custom_call.1} parent=1 // pred_check_branch
      %108 = sbr.rel (0) target = $region41
    $region40: #{tpu_custom_call.1} parent=1 // pred_region
      %109 = dma.done [#allocation6], 512
    $region41: #{tpu_custom_call.1} parent=1 // pred_fallthru
      _
    // Predicated region
    $region42: #{tpu_custom_call.1} parent=1 // pred_check
      _
    $region43: #{tpu_custom_call.1} parent=1 // pred_check_branch
      %111 = sbr.rel (0) target = $region45
    $region44: #{tpu_custom_call.1} parent=1 // pred_region
      %112 = dma.done [#allocation9], 256
    $region45: #{tpu_custom_call.1} parent=1 // pred_fallthru
      _
    // Predicated region
    $region46: #{tpu_custom_call.1} parent=1 // pred_check
      _
    $region47: #{tpu_custom_call.1} parent=1 // pred_check_branch
      %114 = sbr.rel (0) target = $region49
    $region48: #{tpu_custom_call.1} parent=1 // pred_region
      %115 = dma.done [#allocation9], 256
    $region49: #{tpu_custom_call.1} parent=1 // pred_fallthru
      _
    // Predicated region
    $region50: #{tpu_custom_call.1} parent=1 // pred_check
      _
    $region51: #{tpu_custom_call.1} parent=1 // pred_check_branch
      %117 = sbr.rel (0) target = $region53
    $region52: #{tpu_custom_call.1} parent=1 // pred_region
      %118 = dma.done [#allocation12], 256
    $region53: #{tpu_custom_call.1} parent=1 // pred_fallthru
      _
    // Predicated region
    $region54: #{tpu_custom_call.1} parent=1 // pred_check
      _
    $region55: #{tpu_custom_call.1} parent=1 // pred_check_branch
      %120 = sbr.rel (0) target = $region57
    $region56: #{tpu_custom_call.1} parent=1 // pred_region
      %121 = dma.done [#allocation12], 256
    $region57: #{tpu_custom_call.1} parent=1 // pred_fallthru
      _
    %v122 = vld [vmem:[#allocation2] sm:$0xff]
    %v123 = vld [vmem:[#allocation2 + $0x8] sm:$0xff]
    %v124 = vld [vmem:[#allocation5] sm:$0xff]
    %v125 = vld [vmem:[#allocation5 + $0x8] sm:$0xff]
    %v126 = vld [vmem:[#allocation5 + $0x10] sm:$0xff]
    %v127 = vld [vmem:[#allocation5 + $0x18] sm:$0xff]
    %vm128 = vcmask 261120
    %v130 = vsel %vm128, %v122, 0
    %v133 = vsel %vm128, %v123, 0
    %135 = vmatprep.subr.mxu0 0.0
    %136 = vmatpush1.msra.mxu0 0.0
    %137 = vmatprep.subr.mxu0 0.0
    %138 = vmatpush1.msra.mxu0 0.0
    %139 = vmatprep.subr.mxu0 0.0
    %140 = vmatpush1.msra.mxu0 0.0
    %141 = vmatprep.subr.mxu0 0.0
    %142 = vmatpush1.msra.mxu0 0.0
    %143 = vmatprep.subr.mxu0 0.0
    %144 = vmatpush1.msra.mxu0 0.0
    %145 = vmatprep.subr.mxu0 0.0
    %146 = vmatpush1.msra.mxu0 0.0
    %147 = vmatprep.subr.mxu0 0.0
    %148 = vmatpush1.msra.mxu0 0.0
    %149 = vmatprep.subr.mxu0 0.0
    %150 = vmatpush1.msra.mxu0 0.0
    %151 = vmatprep.subr.mxu0 0.0
    %152 = vmatpush1.msra.mxu0 0.0
    %153 = vmatprep.subr.mxu0 0.0
    %154 = vmatpush1.msra.mxu0 0.0
    %155 = vmatprep.subr.mxu0 0.0
    %156 = vmatpush1.msra.mxu0 0.0
    %157 = vmatprep.subr.mxu0 0.0
    %158 = vmatpush1.msra.mxu0 0.0
    %159 = vmatprep.subr.mxu0 0.0
    %160 = vmatpush1.msra.mxu0 %v127
    %161 = vmatprep.subr.mxu0 0.0
    %162 = vmatpush1.msra.mxu0 %v126
    %163 = vmatprep.subr.mxu0 0.0
    %164 = vmatpush1.msra.mxu0 %v125
    %165 = vmatprep.subr.mxu0 0.0
    %166 = vmatpush1.msra.mxu0 %v124
    %167 = vmatprep.subr.mxu0 0.0
    %168 = vmatpush2.msra.mxu0 0.0
    %169 = vmatprep.subr.mxu0 0.0
    %170 = vmatpush2.msra.mxu0 0.0
    %171 = vmatprep.subr.mxu0 0.0
    %172 = vmatpush2.msra.mxu0 0.0
    %173 = vmatprep.subr.mxu0 0.0
    %174 = vmatpush2.msra.mxu0 0.0
    %175 = vmatprep.subr.mxu0 0.0
    %176 = vmatpush2.msra.mxu0 0.0
    %177 = vmatprep.subr.mxu0 0.0
    %178 = vmatpush2.msra.mxu0 0.0
    %179 = vmatprep.subr.mxu0 0.0
    %180 = vmatpush2.msra.mxu0 0.0
    %181 = vmatprep.subr.mxu0 0.0
    %182 = vmatpush2.msra.mxu0 0.0
    %183 = vmatprep.subr.mxu0 0.0
    %184 = vmatpush2.msra.mxu0 0.0
    %185 = vmatprep.subr.mxu0 0.0
    %186 = vmatpush2.msra.mxu0 0.0
    %187 = vmatprep.subr.mxu0 0.0
    %188 = vmatpush2.msra.mxu0 0.0
    %189 = vmatprep.subr.mxu0 0.0
    %190 = vmatpush2.msra.mxu0 0.0
    %191 = vmatprep.subr.mxu0 0.0
    %192 = vmatpush2.msra.mxu0 0.0
    %193 = vmatprep.subr.mxu0 0.0
    %194 = vmatpush2.msra.mxu0 0.0
    %195 = vmatprep.subr.mxu0 0.0
    %196 = vmatpush2.msra.mxu0 0.0
    %197 = vmatprep.subr.mxu0 0.0
    %198 = vmatpush2.msra.mxu0 0.0
    %199 = vmatprep.mubr.f32.mxu0 0.0
    %200 = vmatmul.mubr.f32.gmra.mxu0 %v130
    %v201 = vpop.f32.mrf.mxu0
    %v202 = vadd.f32 0.0, %v201
    %v203 = vpop.f32.mrf.mxu0
    %204 = vmatprep.mubr.f32.mxu0 0.0
    %205 = vmatmul.mubr.f32.gmra.mxu0 %v133
    %v206 = vpop.f32.mrf.mxu0
    %v207 = vadd.f32 0.0, %v206
    %v208 = vpop.f32.mrf.mxu0
    %209 = vdwg.mxu0
    %vm210 = vcmask 1048320
    %211 = vrot.lane.b32.xlu0 %v202, 96
    %v212 = vpop.permute.xlu0 %211
    %v213 = vsel %vm210, %v212, %v202
    %214 = vrot.lane.b32.xlu0 %v207, 96
    %v215 = vpop.permute.xlu0 %214
    %v216 = vsel %vm210, %v215, %v207
    %217 = vrot.lane.b32.xlu0 %v213, 96
    %v218 = vpop.permute.xlu0 %217
    %219 = vrot.lane.b32.xlu0 %v216, 96
    %v220 = vpop.permute.xlu0 %219
    %v221 = vsel %vm210, %v218, %v202
    %v222 = vsel %vm210, %v220, %v207
    %v223 = vld [vmem:[#allocation8] sm:$0xff]
    %v224 = vld [vmem:[#allocation8 + $0x8] sm:$0xff]
    %v225 = vmul.f32 %v202, %v223
    %v226 = vmul.f32 %v207, %v224
    %v227 = vld [vmem:[#allocation10] sm:$0xff]
    %v228 = vld [vmem:[#allocation10 + $0x8] sm:$0xff]
    %231 = vrot.lane.b32.xlu0 %v227, 1
    %v232 = vpop.permute.xlu0 %231
    %233 = vrot.lane.b32.xlu0 %v228, 1
    %v234 = vpop.permute.xlu0 %233
    %v237 = vmul.f32 %v221, %v232
    %v238 = vmul.f32 %v222, %v234
    %241 = vrot.lane.b32.xlu0 %v237, 127
    %v242 = vpop.permute.xlu0 %241
    %243 = vrot.lane.b32.xlu0 %v238, 127
    %v244 = vpop.permute.xlu0 %243
    %v247 = vadd.f32 %v225, %v242
    %v248 = vadd.f32 %v226, %v244
    %v249 = vld [vmem:[#allocation11] sm:$0xff]
    %v250 = vld [vmem:[#allocation11 + $0x8] sm:$0xff]
    %253 = vrot.lane.b32.xlu0 %v249, 95
    %v254 = vpop.permute.xlu0 %253
    %255 = vrot.lane.b32.xlu0 %v250, 95
    %v256 = vpop.permute.xlu0 %255
    %v259 = vmul.f32 %v221, %v254
    %v260 = vmul.f32 %v218, %v254
    %v261 = vmul.f32 %v222, %v256
    %v262 = vmul.f32 %v220, %v256
    %267 = vrot.lane.b32.xlu0 %v259, 33
    %v268 = vpop.permute.xlu0 %267
    %269 = vrot.lane.b32.xlu0 %v260, 33
    %v270 = vpop.permute.xlu0 %269
    %271 = vrot.lane.b32.xlu0 %v261, 33
    %v272 = vpop.permute.xlu0 %271
    %273 = vrot.lane.b32.xlu0 %v262, 33
    %v274 = vpop.permute.xlu0 %273
    %vm275 = vcmask 269312
    %v276 = vsel %vm275, %v268, %v270
    %v277 = vsel %vm275, %v272, %v274
    %v280 = vadd.f32 %v247, %v276
    %v281 = vadd.f32 %v248, %v277
    %v282 = vld [vmem:[#allocation13] sm:$0xff]
    %v283 = vld [vmem:[#allocation13 + $0x8] sm:$0xff]
    %v284 = vld [vmem:[#allocation7] sm:$0xff]
    %v285 = vld [vmem:[#allocation7 + $0x8] sm:$0xff]
    %v286 = vld [vmem:[#allocation7 + $0x10] sm:$0xff]
    %v287 = vld [vmem:[#allocation7 + $0x18] sm:$0xff]
    %290 = vrot.lane.b32.xlu0 %v280, 96
    %v291 = vpop.permute.xlu0 %290
    %292 = vrot.lane.b32.xlu0 %v281, 96
    %v293 = vpop.permute.xlu0 %292
    %vm294 = vcmask 64512
    %v295 = vsel %vm294, %v280, 0
    %v297 = vsel %vm294, %v281, 0
    %v299 = vsel %vm294, %v291, 0
    %v301 = vsel %vm294, %v293, 0
    %303 = vmatprep.subr.mxu0 0.0
    %304 = vmatpush1.xpose.msra.mxu0 0.0
    %305 = vmatprep.subr.mxu0 0.0
    %306 = vmatpush1.xpose.msra.mxu0 0.0
    %307 = vmatprep.subr.mxu0 0.0
    %308 = vmatpush1.xpose.msra.mxu0 0.0
    %309 = vmatprep.subr.mxu0 0.0
    %310 = vmatpush1.xpose.msra.mxu0 0.0
    %311 = vmatprep.subr.mxu0 0.0
    %312 = vmatpush1.xpose.msra.mxu0 0.0
    %313 = vmatprep.subr.mxu0 0.0
    %314 = vmatpush1.xpose.msra.mxu0 0.0
    %315 = vmatprep.subr.mxu0 0.0
    %316 = vmatpush1.xpose.msra.mxu0 0.0
    %317 = vmatprep.subr.mxu0 0.0
    %318 = vmatpush1.xpose.msra.mxu0 0.0
    %319 = vmatprep.subr.mxu0 0.0
    %320 = vmatpush1.xpose.msra.mxu0 0.0
    %321 = vmatprep.subr.mxu0 0.0
    %322 = vmatpush1.xpose.msra.mxu0 0.0
    %323 = vmatprep.subr.mxu0 0.0
    %324 = vmatpush1.xpose.msra.mxu0 0.0
    %325 = vmatprep.subr.mxu0 0.0
    %326 = vmatpush1.xpose.msra.mxu0 0.0
    %327 = vmatprep.subr.mxu0 0.0
    %328 = vmatpush1.xpose.msra.mxu0 0.0
    %329 = vmatprep.subr.mxu0 0.0
    %330 = vmatpush1.xpose.msra.mxu0 0.0
    %331 = vmatprep.subr.mxu0 0.0
    %332 = vmatpush1.xpose.msra.mxu0 %v301
    %333 = vmatprep.subr.mxu0 0.0
    %334 = vmatpush1.xpose.msra.mxu0 %v299
    %335 = vmatprep.subr.mxu0 0.0
    %336 = vmatpush2.xpose.msra.mxu0 0.0
    %337 = vmatprep.subr.mxu0 0.0
    %338 = vmatpush2.xpose.msra.mxu0 0.0
    %339 = vmatprep.subr.mxu0 0.0
    %340 = vmatpush2.xpose.msra.mxu0 0.0
    %341 = vmatprep.subr.mxu0 0.0
    %342 = vmatpush2.xpose.msra.mxu0 0.0
    %343 = vmatprep.subr.mxu0 0.0
    %344 = vmatpush2.xpose.msra.mxu0 0.0
    %345 = vmatprep.subr.mxu0 0.0
    %346 = vmatpush2.xpose.msra.mxu0 0.0
    %347 = vmatprep.subr.mxu0 0.0
    %348 = vmatpush2.xpose.msra.mxu0 0.0
    %349 = vmatprep.subr.mxu0 0.0
    %350 = vmatpush2.xpose.msra.mxu0 0.0
    %351 = vmatprep.subr.mxu0 0.0
    %352 = vmatpush2.xpose.msra.mxu0 0.0
    %353 = vmatprep.subr.mxu0 0.0
    %354 = vmatpush2.xpose.msra.mxu0 0.0
    %355 = vmatprep.subr.mxu0 0.0
    %356 = vmatpush2.xpose.msra.mxu0 0.0
    %357 = vmatprep.subr.mxu0 0.0
    %358 = vmatpush2.xpose.msra.mxu0 0.0
    %359 = vmatprep.subr.mxu0 0.0
    %360 = vmatpush2.xpose.msra.mxu0 0.0
    %361 = vmatprep.subr.mxu0 0.0
    %362 = vmatpush2.xpose.msra.mxu0 0.0
    %363 = vmatprep.subr.mxu0 0.0
    %364 = vmatpush2.xpose.msra.mxu0 0.0
    %365 = vmatprep.subr.mxu0 0.0
    %366 = vmatpush2.xpose.msra.mxu0 0.0
    %367 = vmatprep.mubr.f32.mxu0 0.0
    %368 = vmatmul.mubr.f32.gmra.mxu0 %v295
    %v369 = vpop.f32.mrf.mxu0
    %v370 = vadd.f32 %v282, %v369
    %v371 = vpop.f32.mrf.mxu0
    %372 = vmatprep.mubr.f32.mxu0 0.0
    %373 = vmatmul.mubr.f32.gmra.mxu0 %v297
    %v374 = vpop.f32.mrf.mxu0
    %v375 = vadd.f32 %v283, %v374
    %v376 = vpop.f32.mrf.mxu0
    %377 = vdwg.mxu0
    %vm378 = vcmask 130048
    %v379 = vsel %vm378, %v370, -inf
    %380 = vmax.xlane.f32.xlu0 %v379
    %v381 = vpop.xlane.xlu0 %380
    %v382 = vsel %vm378, %v375, -inf
    %383 = vmax.xlane.f32.xlu0 %v382
    %v384 = vpop.xlane.xlu0 %383
    %v385 = vsub.f32 %v370, %v381
    %v386 = vsub.f32 %v375, %v384
    %v387 = vmul.f32 %v385, 1.442695
    %v388 = vpow.pop %v387
    %v389 = vmul.f32 %v386, 1.442695
    %v390 = vpow.pop %v389
    %v391 = vsel %vm378, %v388, 0.0
    %392 = vadd.xlane.f32.xlu0 %v391
    %v393 = vpop.xlane.xlu0 %392
    %v394 = vsel %vm378, %v390, 0.0
    %395 = vadd.xlane.f32.xlu0 %v394
    %v396 = vpop.xlane.xlu0 %395
    %v397 = vrcp.pop %v393
    %v398 = vrcp.pop %v396
    %v399 = vmul.f32 %v388, %v397
    %v400 = vmul.f32 %v390, %v398
    %401 = vrot.lane.b32.xlu0 %v280, 64
    %v402 = vpop.permute.xlu0 %401
    %403 = vrot.lane.b32.xlu0 %v281, 64
    %v404 = vpop.permute.xlu0 %403
    %v408 = vsel %vm378, %v399, 0
    %v411 = vsel %vm378, %v400, 0
    %413 = vmatprep.subr.mxu0 0.0
    %414 = vmatpush1.msra.mxu0 0.0
    %415 = vmatprep.subr.mxu0 0.0
    %416 = vmatpush1.msra.mxu0 0.0
    %417 = vmatprep.subr.mxu0 0.0
    %418 = vmatpush1.msra.mxu0 0.0
    %419 = vmatprep.subr.mxu0 0.0
    %420 = vmatpush1.msra.mxu0 0.0
    %421 = vmatprep.subr.mxu0 0.0
    %422 = vmatpush1.msra.mxu0 0.0
    %423 = vmatprep.subr.mxu0 0.0
    %424 = vmatpush1.msra.mxu0 0.0
    %425 = vmatprep.subr.mxu0 0.0
    %426 = vmatpush1.msra.mxu0 0.0
    %427 = vmatprep.subr.mxu0 0.0
    %428 = vmatpush1.msra.mxu0 0.0
    %429 = vmatprep.subr.mxu0 0.0
    %430 = vmatpush1.msra.mxu0 0.0
    %431 = vmatprep.subr.mxu0 0.0
    %432 = vmatpush1.msra.mxu0 0.0
    %433 = vmatprep.subr.mxu0 0.0
    %434 = vmatpush1.msra.mxu0 0.0
    %435 = vmatprep.subr.mxu0 0.0
    %436 = vmatpush1.msra.mxu0 0.0
    %437 = vmatprep.subr.mxu0 0.0
    %438 = vmatpush1.msra.mxu0 0.0
    %439 = vmatprep.subr.mxu0 0.0
    %440 = vmatpush1.msra.mxu0 0.0
    %441 = vmatprep.subr.mxu0 0.0
    %442 = vmatpush1.msra.mxu0 %v404
    %443 = vmatprep.subr.mxu0 0.0
    %444 = vmatpush1.msra.mxu0 %v402
    %445 = vmatprep.subr.mxu0 0.0
    %446 = vmatpush2.msra.mxu0 0.0
    %447 = vmatprep.subr.mxu0 0.0
    %448 = vmatpush2.msra.mxu0 0.0
    %449 = vmatprep.subr.mxu0 0.0
    %450 = vmatpush2.msra.mxu0 0.0
    %451 = vmatprep.subr.mxu0 0.0
    %452 = vmatpush2.msra.mxu0 0.0
    %453 = vmatprep.subr.mxu0 0.0
    %454 = vmatpush2.msra.mxu0 0.0
    %455 = vmatprep.subr.mxu0 0.0
    %456 = vmatpush2.msra.mxu0 0.0
    %457 = vmatprep.subr.mxu0 0.0
    %458 = vmatpush2.msra.mxu0 0.0
    %459 = vmatprep.subr.mxu0 0.0
    %460 = vmatpush2.msra.mxu0 0.0
    %461 = vmatprep.subr.mxu0 0.0
    %462 = vmatpush2.msra.mxu0 0.0
    %463 = vmatprep.subr.mxu0 0.0
    %464 = vmatpush2.msra.mxu0 0.0
    %465 = vmatprep.subr.mxu0 0.0
    %466 = vmatpush2.msra.mxu0 0.0
    %467 = vmatprep.subr.mxu0 0.0
    %468 = vmatpush2.msra.mxu0 0.0
    %469 = vmatprep.subr.mxu0 0.0
    %470 = vmatpush2.msra.mxu0 0.0
    %471 = vmatprep.subr.mxu0 0.0
    %472 = vmatpush2.msra.mxu0 0.0
    %473 = vmatprep.subr.mxu0 0.0
    %474 = vmatpush2.msra.mxu0 0.0
    %475 = vmatprep.subr.mxu0 0.0
    %476 = vmatpush2.msra.mxu0 0.0
    %477 = vmatprep.mubr.f32.mxu0 0.0
    %478 = vmatmul.mubr.f32.gmra.mxu0 %v408
    %v479 = vpop.f32.mrf.mxu0
    %v480 = vadd.f32 0.0, %v479
    %v481 = vpop.f32.mrf.mxu0
    %482 = vmatprep.mubr.f32.mxu0 0.0
    %483 = vmatmul.mubr.f32.gmra.mxu0 %v411
    %v484 = vpop.f32.mrf.mxu0
    %v485 = vadd.f32 0.0, %v484
    %v486 = vpop.f32.mrf.mxu0
    %487 = vdwg.mxu0
    %488 = vrot.lane.b32.xlu0 %v280, 120
    %v489 = vpop.permute.xlu0 %488
    %490 = vrot.lane.b32.xlu0 %v281, 120
    %v491 = vpop.permute.xlu0 %490
    %492 = vrot.lane.b32.xlu0 %v280, 88
    %v493 = vpop.permute.xlu0 %492
    %494 = vrot.lane.b32.xlu0 %v281, 88
    %v495 = vpop.permute.xlu0 %494
    %v496 = vsel %vm294, %v489, 0
    %v498 = vsel %vm294, %v491, 0
    %v500 = vsel %vm294, %v493, 0
    %v502 = vsel %vm294, %v495, 0
    %504 = vmatprep.subr.mxu0 0.0
    %505 = vmatpush1.xpose.msra.mxu0 0.0
    %506 = vmatprep.subr.mxu0 0.0
    %507 = vmatpush1.xpose.msra.mxu0 0.0
    %508 = vmatprep.subr.mxu0 0.0
    %509 = vmatpush1.xpose.msra.mxu0 0.0
    %510 = vmatprep.subr.mxu0 0.0
    %511 = vmatpush1.xpose.msra.mxu0 0.0
    %512 = vmatprep.subr.mxu0 0.0
    %513 = vmatpush1.xpose.msra.mxu0 0.0
    %514 = vmatprep.subr.mxu0 0.0
    %515 = vmatpush1.xpose.msra.mxu0 0.0
    %516 = vmatprep.subr.mxu0 0.0
    %517 = vmatpush1.xpose.msra.mxu0 0.0
    %518 = vmatprep.subr.mxu0 0.0
    %519 = vmatpush1.xpose.msra.mxu0 0.0
    %520 = vmatprep.subr.mxu0 0.0
    %521 = vmatpush1.xpose.msra.mxu0 0.0
    %522 = vmatprep.subr.mxu0 0.0
    %523 = vmatpush1.xpose.msra.mxu0 0.0
    %524 = vmatprep.subr.mxu0 0.0
    %525 = vmatpush1.xpose.msra.mxu0 0.0
    %526 = vmatprep.subr.mxu0 0.0
    %527 = vmatpush1.xpose.msra.mxu0 0.0
    %528 = vmatprep.subr.mxu0 0.0
    %529 = vmatpush1.xpose.msra.mxu0 0.0
    %530 = vmatprep.subr.mxu0 0.0
    %531 = vmatpush1.xpose.msra.mxu0 0.0
    %532 = vmatprep.subr.mxu0 0.0
    %533 = vmatpush1.xpose.msra.mxu0 %v502
    %534 = vmatprep.subr.mxu0 0.0
    %535 = vmatpush1.xpose.msra.mxu0 %v500
    %536 = vmatprep.subr.mxu0 0.0
    %537 = vmatpush2.xpose.msra.mxu0 0.0
    %538 = vmatprep.subr.mxu0 0.0
    %539 = vmatpush2.xpose.msra.mxu0 0.0
    %540 = vmatprep.subr.mxu0 0.0
    %541 = vmatpush2.xpose.msra.mxu0 0.0
    %542 = vmatprep.subr.mxu0 0.0
    %543 = vmatpush2.xpose.msra.mxu0 0.0
    %544 = vmatprep.subr.mxu0 0.0
    %545 = vmatpush2.xpose.msra.mxu0 0.0
    %546 = vmatprep.subr.mxu0 0.0
    %547 = vmatpush2.xpose.msra.mxu0 0.0
    %548 = vmatprep.subr.mxu0 0.0
    %549 = vmatpush2.xpose.msra.mxu0 0.0
    %550 = vmatprep.subr.mxu0 0.0
    %551 = vmatpush2.xpose.msra.mxu0 0.0
    %552 = vmatprep.subr.mxu0 0.0
    %553 = vmatpush2.xpose.msra.mxu0 0.0
    %554 = vmatprep.subr.mxu0 0.0
    %555 = vmatpush2.xpose.msra.mxu0 0.0
    %556 = vmatprep.subr.mxu0 0.0
    %557 = vmatpush2.xpose.msra.mxu0 0.0
    %558 = vmatprep.subr.mxu0 0.0
    %559 = vmatpush2.xpose.msra.mxu0 0.0
    %560 = vmatprep.subr.mxu0 0.0
    %561 = vmatpush2.xpose.msra.mxu0 0.0
    %562 = vmatprep.subr.mxu0 0.0
    %563 = vmatpush2.xpose.msra.mxu0 0.0
    %564 = vmatprep.subr.mxu0 0.0
    %565 = vmatpush2.xpose.msra.mxu0 0.0
    %566 = vmatprep.subr.mxu0 0.0
    %567 = vmatpush2.xpose.msra.mxu0 0.0
    %568 = vmatprep.mubr.f32.mxu0 0.0
    %569 = vmatmul.mubr.f32.gmra.mxu0 %v496
    %v570 = vpop.f32.mrf.mxu0
    %v571 = vadd.f32 %v282, %v570
    %v572 = vpop.f32.mrf.mxu0
    %573 = vmatprep.mubr.f32.mxu0 0.0
    %574 = vmatmul.mubr.f32.gmra.mxu0 %v498
    %v575 = vpop.f32.mrf.mxu0
    %v576 = vadd.f32 %v283, %v575
    %v577 = vpop.f32.mrf.mxu0
    %578 = vdwg.mxu0
    %v579 = vsel %vm378, %v571, -inf
    %580 = vmax.xlane.f32.xlu0 %v579
    %v581 = vpop.xlane.xlu0 %580
    %v582 = vsel %vm378, %v576, -inf
    %583 = vmax.xlane.f32.xlu0 %v582
    %v584 = vpop.xlane.xlu0 %583
    %v585 = vsub.f32 %v571, %v581
    %v586 = vsub.f32 %v576, %v584
    %v587 = vmul.f32 %v585, 1.442695
    %v588 = vpow.pop %v587
    %v589 = vmul.f32 %v586, 1.442695
    %v590 = vpow.pop %v589
    %v591 = vsel %vm378, %v588, 0.0
    %592 = vadd.xlane.f32.xlu0 %v591
    %v593 = vpop.xlane.xlu0 %592
    %v594 = vsel %vm378, %v590, 0.0
    %595 = vadd.xlane.f32.xlu0 %v594
    %v596 = vpop.xlane.xlu0 %595
    %v597 = vrcp.pop %v593
    %v598 = vrcp.pop %v596
    %v599 = vmul.f32 %v588, %v597
    %v600 = vmul.f32 %v590, %v598
    %601 = vrot.lane.b32.xlu0 %v280, 56
    %v602 = vpop.permute.xlu0 %601
    %603 = vrot.lane.b32.xlu0 %v281, 56
    %v604 = vpop.permute.xlu0 %603
    %v608 = vsel %vm378, %v599, 0
    %v611 = vsel %vm378, %v600, 0
    %613 = vmatprep.subr.mxu0 0.0
    %614 = vmatpush1.msra.mxu0 0.0
    %615 = vmatprep.subr.mxu0 0.0
    %616 = vmatpush1.msra.mxu0 0.0
    %617 = vmatprep.subr.mxu0 0.0
    %618 = vmatpush1.msra.mxu0 0.0
    %619 = vmatprep.subr.mxu0 0.0
    %620 = vmatpush1.msra.mxu0 0.0
    %621 = vmatprep.subr.mxu0 0.0
    %622 = vmatpush1.msra.mxu0 0.0
    %623 = vmatprep.subr.mxu0 0.0
    %624 = vmatpush1.msra.mxu0 0.0
    %625 = vmatprep.subr.mxu0 0.0
    %626 = vmatpush1.msra.mxu0 0.0
    %627 = vmatprep.subr.mxu0 0.0
    %628 = vmatpush1.msra.mxu0 0.0
    %629 = vmatprep.subr.mxu0 0.0
    %630 = vmatpush1.msra.mxu0 0.0
    %631 = vmatprep.subr.mxu0 0.0
    %632 = vmatpush1.msra.mxu0 0.0
    %633 = vmatprep.subr.mxu0 0.0
    %634 = vmatpush1.msra.mxu0 0.0
    %635 = vmatprep.subr.mxu0 0.0
    %636 = vmatpush1.msra.mxu0 0.0
    %637 = vmatprep.subr.mxu0 0.0
    %638 = vmatpush1.msra.mxu0 0.0
    %639 = vmatprep.subr.mxu0 0.0
    %640 = vmatpush1.msra.mxu0 0.0
    %641 = vmatprep.subr.mxu0 0.0
    %642 = vmatpush1.msra.mxu0 %v604
    %643 = vmatprep.subr.mxu0 0.0
    %644 = vmatpush1.msra.mxu0 %v602
    %645 = vmatprep.subr.mxu0 0.0
    %646 = vmatpush2.msra.mxu0 0.0
    %647 = vmatprep.subr.mxu0 0.0
    %648 = vmatpush2.msra.mxu0 0.0
    %649 = vmatprep.subr.mxu0 0.0
    %650 = vmatpush2.msra.mxu0 0.0
    %651 = vmatprep.subr.mxu0 0.0
    %652 = vmatpush2.msra.mxu0 0.0
    %653 = vmatprep.subr.mxu0 0.0
    %654 = vmatpush2.msra.mxu0 0.0
    %655 = vmatprep.subr.mxu0 0.0
    %656 = vmatpush2.msra.mxu0 0.0
    %657 = vmatprep.subr.mxu0 0.0
    %658 = vmatpush2.msra.mxu0 0.0
    %659 = vmatprep.subr.mxu0 0.0
    %660 = vmatpush2.msra.mxu0 0.0
    %661 = vmatprep.subr.mxu0 0.0
    %662 = vmatpush2.msra.mxu0 0.0
    %663 = vmatprep.subr.mxu0 0.0
    %664 = vmatpush2.msra.mxu0 0.0
    %665 = vmatprep.subr.mxu0 0.0
    %666 = vmatpush2.msra.mxu0 0.0
    %667 = vmatprep.subr.mxu0 0.0
    %668 = vmatpush2.msra.mxu0 0.0
    %669 = vmatprep.subr.mxu0 0.0
    %670 = vmatpush2.msra.mxu0 0.0
    %671 = vmatprep.subr.mxu0 0.0
    %672 = vmatpush2.msra.mxu0 0.0
    %673 = vmatprep.subr.mxu0 0.0
    %674 = vmatpush2.msra.mxu0 0.0
    %675 = vmatprep.subr.mxu0 0.0
    %676 = vmatpush2.msra.mxu0 0.0
    %677 = vmatprep.mubr.f32.mxu0 0.0
    %678 = vmatmul.mubr.f32.gmra.mxu0 %v608
    %v679 = vpop.f32.mrf.mxu0
    %v680 = vadd.f32 0.0, %v679
    %v681 = vpop.f32.mrf.mxu0
    %682 = vmatprep.mubr.f32.mxu0 0.0
    %683 = vmatmul.mubr.f32.gmra.mxu0 %v611
    %v684 = vpop.f32.mrf.mxu0
    %v685 = vadd.f32 0.0, %v684
    %v686 = vpop.f32.mrf.mxu0
    %687 = vdwg.mxu0
    %v689 = vsel %vm294, %v680, 0
    %v692 = vsel %vm294, %v685, 0
    %694 = vmatprep.subr.mxu0 0.0
    %695 = vmatpush1.msra.mxu0 0.0
    %696 = vmatprep.subr.mxu0 0.0
    %697 = vmatpush1.msra.mxu0 0.0
    %698 = vmatprep.subr.mxu0 0.0
    %699 = vmatpush1.msra.mxu0 0.0
    %700 = vmatprep.subr.mxu0 0.0
    %701 = vmatpush1.msra.mxu0 0.0
    %702 = vmatprep.subr.mxu0 0.0
    %703 = vmatpush1.msra.mxu0 0.0
    %704 = vmatprep.subr.mxu0 0.0
    %705 = vmatpush1.msra.mxu0 0.0
    %706 = vmatprep.subr.mxu0 0.0
    %707 = vmatpush1.msra.mxu0 0.0
    %708 = vmatprep.subr.mxu0 0.0
    %709 = vmatpush1.msra.mxu0 0.0
    %710 = vmatprep.subr.mxu0 0.0
    %711 = vmatpush1.msra.mxu0 0.0
    %712 = vmatprep.subr.mxu0 0.0
    %713 = vmatpush1.msra.mxu0 0.0
    %714 = vmatprep.subr.mxu0 0.0
    %715 = vmatpush1.msra.mxu0 0.0
    %716 = vmatprep.subr.mxu0 0.0
    %717 = vmatpush1.msra.mxu0 0.0
    %718 = vmatprep.subr.mxu0 0.0
    %719 = vmatpush1.msra.mxu0 0.0
    %720 = vmatprep.subr.mxu0 0.0
    %721 = vmatpush1.msra.mxu0 0.0
    %722 = vmatprep.subr.mxu0 0.0
    %723 = vmatpush1.msra.mxu0 0.0
    %724 = vmatprep.subr.mxu0 0.0
    %725 = vmatpush1.msra.mxu0 %v285
    %726 = vmatprep.subr.mxu0 0.0
    %727 = vmatpush2.msra.mxu0 0.0
    %728 = vmatprep.subr.mxu0 0.0
    %729 = vmatpush2.msra.mxu0 0.0
    %730 = vmatprep.subr.mxu0 0.0
    %731 = vmatpush2.msra.mxu0 0.0
    %732 = vmatprep.subr.mxu0 0.0
    %733 = vmatpush2.msra.mxu0 0.0
    %734 = vmatprep.subr.mxu0 0.0
    %735 = vmatpush2.msra.mxu0 0.0
    %736 = vmatprep.subr.mxu0 0.0
    %737 = vmatpush2.msra.mxu0 0.0
    %738 = vmatprep.subr.mxu0 0.0
    %739 = vmatpush2.msra.mxu0 0.0
    %740 = vmatprep.subr.mxu0 0.0
    %741 = vmatpush2.msra.mxu0 0.0
    %742 = vmatprep.subr.mxu0 0.0
    %743 = vmatpush2.msra.mxu0 0.0
    %744 = vmatprep.subr.mxu0 0.0
    %745 = vmatpush2.msra.mxu0 0.0
    %746 = vmatprep.subr.mxu0 0.0
    %747 = vmatpush2.msra.mxu0 0.0
    %748 = vmatprep.subr.mxu0 0.0
    %749 = vmatpush2.msra.mxu0 0.0
    %750 = vmatprep.subr.mxu0 0.0
    %751 = vmatpush2.msra.mxu0 0.0
    %752 = vmatprep.subr.mxu0 0.0
    %753 = vmatpush2.msra.mxu0 0.0
    %754 = vmatprep.subr.mxu0 0.0
    %755 = vmatpush2.msra.mxu0 0.0
    %756 = vmatprep.subr.mxu0 0.0
    %757 = vmatpush2.msra.mxu0 0.0
    %758 = vmatprep.mubr.f32.mxu0 0.0
    %759 = vmatmul.mubr.f32.gmra.mxu0 %v689
    %v760 = vpop.f32.mrf.mxu0
    %v761 = vadd.f32 0.0, %v760
    %v762 = vpop.f32.mrf.mxu0
    %763 = vmatprep.mubr.f32.mxu0 0.0
    %764 = vmatmul.mubr.f32.gmra.mxu0 %v692
    %v765 = vpop.f32.mrf.mxu0
    %v766 = vadd.f32 0.0, %v765
    %v767 = vpop.f32.mrf.mxu0
    %768 = vdwg.mxu0
    %v770 = vsel %vm294, %v480, 0
    %v773 = vsel %vm294, %v485, 0
    %775 = vmatprep.subr.mxu0 0.0
    %776 = vmatpush1.msra.mxu0 0.0
    %777 = vmatprep.subr.mxu0 0.0
    %778 = vmatpush1.msra.mxu0 0.0
    %779 = vmatprep.subr.mxu0 0.0
    %780 = vmatpush1.msra.mxu0 0.0
    %781 = vmatprep.subr.mxu0 0.0
    %782 = vmatpush1.msra.mxu0 0.0
    %783 = vmatprep.subr.mxu0 0.0
    %784 = vmatpush1.msra.mxu0 0.0
    %785 = vmatprep.subr.mxu0 0.0
    %786 = vmatpush1.msra.mxu0 0.0
    %787 = vmatprep.subr.mxu0 0.0
    %788 = vmatpush1.msra.mxu0 0.0
    %789 = vmatprep.subr.mxu0 0.0
    %790 = vmatpush1.msra.mxu0 0.0
    %791 = vmatprep.subr.mxu0 0.0
    %792 = vmatpush1.msra.mxu0 0.0
    %793 = vmatprep.subr.mxu0 0.0
    %794 = vmatpush1.msra.mxu0 0.0
    %795 = vmatprep.subr.mxu0 0.0
    %796 = vmatpush1.msra.mxu0 0.0
    %797 = vmatprep.subr.mxu0 0.0
    %798 = vmatpush1.msra.mxu0 0.0
    %799 = vmatprep.subr.mxu0 0.0
    %800 = vmatpush1.msra.mxu0 0.0
    %801 = vmatprep.subr.mxu0 0.0
    %802 = vmatpush1.msra.mxu0 0.0
    %803 = vmatprep.subr.mxu0 0.0
    %804 = vmatpush1.msra.mxu0 0.0
    %805 = vmatprep.subr.mxu0 0.0
    %806 = vmatpush1.msra.mxu0 %v284
    %807 = vmatprep.subr.mxu0 0.0
    %808 = vmatpush2.msra.mxu0 0.0
    %809 = vmatprep.subr.mxu0 0.0
    %810 = vmatpush2.msra.mxu0 0.0
    %811 = vmatprep.subr.mxu0 0.0
    %812 = vmatpush2.msra.mxu0 0.0
    %813 = vmatprep.subr.mxu0 0.0
    %814 = vmatpush2.msra.mxu0 0.0
    %815 = vmatprep.subr.mxu0 0.0
    %816 = vmatpush2.msra.mxu0 0.0
    %817 = vmatprep.subr.mxu0 0.0
    %818 = vmatpush2.msra.mxu0 0.0
    %819 = vmatprep.subr.mxu0 0.0
    %820 = vmatpush2.msra.mxu0 0.0
    %821 = vmatprep.subr.mxu0 0.0
    %822 = vmatpush2.msra.mxu0 0.0
    %823 = vmatprep.subr.mxu0 0.0
    %824 = vmatpush2.msra.mxu0 0.0
    %825 = vmatprep.subr.mxu0 0.0
    %826 = vmatpush2.msra.mxu0 0.0
    %827 = vmatprep.subr.mxu0 0.0
    %828 = vmatpush2.msra.mxu0 0.0
    %829 = vmatprep.subr.mxu0 0.0
    %830 = vmatpush2.msra.mxu0 0.0
    %831 = vmatprep.subr.mxu0 0.0
    %832 = vmatpush2.msra.mxu0 0.0
    %833 = vmatprep.subr.mxu0 0.0
    %834 = vmatpush2.msra.mxu0 0.0
    %835 = vmatprep.subr.mxu0 0.0
    %836 = vmatpush2.msra.mxu0 0.0
    %837 = vmatprep.subr.mxu0 0.0
    %838 = vmatpush2.msra.mxu0 0.0
    %839 = vmatprep.mubr.f32.mxu0 0.0
    %840 = vmatmul.mubr.f32.gmra.mxu0 %v770
    %v841 = vpop.f32.mrf.mxu0
    %v842 = vadd.f32 %v761, %v841
    %v843 = vpop.f32.mrf.mxu0
    %844 = vmatprep.mubr.f32.mxu0 0.0
    %845 = vmatmul.mubr.f32.gmra.mxu0 %v773
    %v846 = vpop.f32.mrf.mxu0
    %v847 = vadd.f32 %v766, %v846
    %v848 = vpop.f32.mrf.mxu0
    %849 = vdwg.mxu0
    %850 = vrot.lane.b32.xlu0 %v280, 112
    %v851 = vpop.permute.xlu0 %850
    %852 = vrot.lane.b32.xlu0 %v281, 112
    %v853 = vpop.permute.xlu0 %852
    %854 = vrot.lane.b32.xlu0 %v280, 80
    %v855 = vpop.permute.xlu0 %854
    %856 = vrot.lane.b32.xlu0 %v281, 80
    %v857 = vpop.permute.xlu0 %856
    %v858 = vsel %vm294, %v851, 0
    %v860 = vsel %vm294, %v853, 0
    %v862 = vsel %vm294, %v855, 0
    %v864 = vsel %vm294, %v857, 0
    %866 = vmatprep.subr.mxu0 0.0
    %867 = vmatpush1.xpose.msra.mxu0 0.0
    %868 = vmatprep.subr.mxu0 0.0
    %869 = vmatpush1.xpose.msra.mxu0 0.0
    %870 = vmatprep.subr.mxu0 0.0
    %871 = vmatpush1.xpose.msra.mxu0 0.0
    %872 = vmatprep.subr.mxu0 0.0
    %873 = vmatpush1.xpose.msra.mxu0 0.0
    %874 = vmatprep.subr.mxu0 0.0
    %875 = vmatpush1.xpose.msra.mxu0 0.0
    %876 = vmatprep.subr.mxu0 0.0
    %877 = vmatpush1.xpose.msra.mxu0 0.0
    %878 = vmatprep.subr.mxu0 0.0
    %879 = vmatpush1.xpose.msra.mxu0 0.0
    %880 = vmatprep.subr.mxu0 0.0
    %881 = vmatpush1.xpose.msra.mxu0 0.0
    %882 = vmatprep.subr.mxu0 0.0
    %883 = vmatpush1.xpose.msra.mxu0 0.0
    %884 = vmatprep.subr.mxu0 0.0
    %885 = vmatpush1.xpose.msra.mxu0 0.0
    %886 = vmatprep.subr.mxu0 0.0
    %887 = vmatpush1.xpose.msra.mxu0 0.0
    %888 = vmatprep.subr.mxu0 0.0
    %889 = vmatpush1.xpose.msra.mxu0 0.0
    %890 = vmatprep.subr.mxu0 0.0
    %891 = vmatpush1.xpose.msra.mxu0 0.0
    %892 = vmatprep.subr.mxu0 0.0
    %893 = vmatpush1.xpose.msra.mxu0 0.0
    %894 = vmatprep.subr.mxu0 0.0
    %895 = vmatpush1.xpose.msra.mxu0 %v864
    %896 = vmatprep.subr.mxu0 0.0
    %897 = vmatpush1.xpose.msra.mxu0 %v862
    %898 = vmatprep.subr.mxu0 0.0
    %899 = vmatpush2.xpose.msra.mxu0 0.0
    %900 = vmatprep.subr.mxu0 0.0
    %901 = vmatpush2.xpose.msra.mxu0 0.0
    %902 = vmatprep.subr.mxu0 0.0
    %903 = vmatpush2.xpose.msra.mxu0 0.0
    %904 = vmatprep.subr.mxu0 0.0
    %905 = vmatpush2.xpose.msra.mxu0 0.0
    %906 = vmatprep.subr.mxu0 0.0
    %907 = vmatpush2.xpose.msra.mxu0 0.0
    %908 = vmatprep.subr.mxu0 0.0
    %909 = vmatpush2.xpose.msra.mxu0 0.0
    %910 = vmatprep.subr.mxu0 0.0
    %911 = vmatpush2.xpose.msra.mxu0 0.0
    %912 = vmatprep.subr.mxu0 0.0
    %913 = vmatpush2.xpose.msra.mxu0 0.0
    %914 = vmatprep.subr.mxu0 0.0
    %915 = vmatpush2.xpose.msra.mxu0 0.0
    %916 = vmatprep.subr.mxu0 0.0
    %917 = vmatpush2.xpose.msra.mxu0 0.0
    %918 = vmatprep.subr.mxu0 0.0
    %919 = vmatpush2.xpose.msra.mxu0 0.0
    %920 = vmatprep.subr.mxu0 0.0
    %921 = vmatpush2.xpose.msra.mxu0 0.0
    %922 = vmatprep.subr.mxu0 0.0
    %923 = vmatpush2.xpose.msra.mxu0 0.0
    %924 = vmatprep.subr.mxu0 0.0
    %925 = vmatpush2.xpose.msra.mxu0 0.0
    %926 = vmatprep.subr.mxu0 0.0
    %927 = vmatpush2.xpose.msra.mxu0 0.0
    %928 = vmatprep.subr.mxu0 0.0
    %929 = vmatpush2.xpose.msra.mxu0 0.0
    %930 = vmatprep.mubr.f32.mxu0 0.0
    %931 = vmatmul.mubr.f32.gmra.mxu0 %v858
    %v932 = vpop.f32.mrf.mxu0
    %v933 = vadd.f32 %v282, %v932
    %v934 = vpop.f32.mrf.mxu0
    %935 = vmatprep.mubr.f32.mxu0 0.0
    %936 = vmatmul.mubr.f32.gmra.mxu0 %v860
    %v937 = vpop.f32.mrf.mxu0
    %v938 = vadd.f32 %v283, %v937
    %v939 = vpop.f32.mrf.mxu0
    %940 = vdwg.mxu0
    %v941 = vsel %vm378, %v933, -inf
    %942 = vmax.xlane.f32.xlu0 %v941
    %v943 = vpop.xlane.xlu0 %942
    %v944 = vsel %vm378, %v938, -inf
    %945 = vmax.xlane.f32.xlu0 %v944
    %v946 = vpop.xlane.xlu0 %945
    %v947 = vsub.f32 %v933, %v943
    %v948 = vsub.f32 %v938, %v946
    %v949 = vmul.f32 %v947, 1.442695
    %v950 = vpow.pop %v949
    %v951 = vmul.f32 %v948, 1.442695
    %v952 = vpow.pop %v951
    %v953 = vsel %vm378, %v950, 0.0
    %954 = vadd.xlane.f32.xlu0 %v953
    %v955 = vpop.xlane.xlu0 %954
    %v956 = vsel %vm378, %v952, 0.0
    %957 = vadd.xlane.f32.xlu0 %v956
    %v958 = vpop.xlane.xlu0 %957
    %v959 = vrcp.pop %v955
    %v960 = vrcp.pop %v958
    %v961 = vmul.f32 %v950, %v959
    %v962 = vmul.f32 %v952, %v960
    %963 = vrot.lane.b32.xlu0 %v280, 48
    %v964 = vpop.permute.xlu0 %963
    %965 = vrot.lane.b32.xlu0 %v281, 48
    %v966 = vpop.permute.xlu0 %965
    %v970 = vsel %vm378, %v961, 0
    %v973 = vsel %vm378, %v962, 0
    %975 = vmatprep.subr.mxu0 0.0
    %976 = vmatpush1.msra.mxu0 0.0
    %977 = vmatprep.subr.mxu0 0.0
    %978 = vmatpush1.msra.mxu0 0.0
    %979 = vmatprep.subr.mxu0 0.0
    %980 = vmatpush1.msra.mxu0 0.0
    %981 = vmatprep.subr.mxu0 0.0
    %982 = vmatpush1.msra.mxu0 0.0
    %983 = vmatprep.subr.mxu0 0.0
    %984 = vmatpush1.msra.mxu0 0.0
    %985 = vmatprep.subr.mxu0 0.0
    %986 = vmatpush1.msra.mxu0 0.0
    %987 = vmatprep.subr.mxu0 0.0
    %988 = vmatpush1.msra.mxu0 0.0
    %989 = vmatprep.subr.mxu0 0.0
    %990 = vmatpush1.msra.mxu0 0.0
    %991 = vmatprep.subr.mxu0 0.0
    %992 = vmatpush1.msra.mxu0 0.0
    %993 = vmatprep.subr.mxu0 0.0
    %994 = vmatpush1.msra.mxu0 0.0
    %995 = vmatprep.subr.mxu0 0.0
    %996 = vmatpush1.msra.mxu0 0.0
    %997 = vmatprep.subr.mxu0 0.0
    %998 = vmatpush1.msra.mxu0 0.0
    %999 = vmatprep.subr.mxu0 0.0
    %1000 = vmatpush1.msra.mxu0 0.0
    %1001 = vmatprep.subr.mxu0 0.0
    %1002 = vmatpush1.msra.mxu0 0.0
    %1003 = vmatprep.subr.mxu0 0.0
    %1004 = vmatpush1.msra.mxu0 %v966
    %1005 = vmatprep.subr.mxu0 0.0
    %1006 = vmatpush1.msra.mxu0 %v964
    %1007 = vmatprep.subr.mxu0 0.0
    %1008 = vmatpush2.msra.mxu0 0.0
    %1009 = vmatprep.subr.mxu0 0.0
    %1010 = vmatpush2.msra.mxu0 0.0
    %1011 = vmatprep.subr.mxu0 0.0
    %1012 = vmatpush2.msra.mxu0 0.0
    %1013 = vmatprep.subr.mxu0 0.0
    %1014 = vmatpush2.msra.mxu0 0.0
    %1015 = vmatprep.subr.mxu0 0.0
    %1016 = vmatpush2.msra.mxu0 0.0
    %1017 = vmatprep.subr.mxu0 0.0
    %1018 = vmatpush2.msra.mxu0 0.0
    %1019 = vmatprep.subr.mxu0 0.0
    %1020 = vmatpush2.msra.mxu0 0.0
    %1021 = vmatprep.subr.mxu0 0.0
    %1022 = vmatpush2.msra.mxu0 0.0
    %1023 = vmatprep.subr.mxu0 0.0
    %1024 = vmatpush2.msra.mxu0 0.0
    %1025 = vmatprep.subr.mxu0 0.0
    %1026 = vmatpush2.msra.mxu0 0.0
    %1027 = vmatprep.subr.mxu0 0.0
    %1028 = vmatpush2.msra.mxu0 0.0
    %1029 = vmatprep.subr.mxu0 0.0
    %1030 = vmatpush2.msra.mxu0 0.0
    %1031 = vmatprep.subr.mxu0 0.0
    %1032 = vmatpush2.msra.mxu0 0.0
    %1033 = vmatprep.subr.mxu0 0.0
    %1034 = vmatpush2.msra.mxu0 0.0
    %1035 = vmatprep.subr.mxu0 0.0
    %1036 = vmatpush2.msra.mxu0 0.0
    %1037 = vmatprep.subr.mxu0 0.0
    %1038 = vmatpush2.msra.mxu0 0.0
    %1039 = vmatprep.mubr.f32.mxu0 0.0
    %1040 = vmatmul.mubr.f32.gmra.mxu0 %v970
    %v1041 = vpop.f32.mrf.mxu0
    %v1042 = vadd.f32 0.0, %v1041
    %v1043 = vpop.f32.mrf.mxu0
    %1044 = vmatprep.mubr.f32.mxu0 0.0
    %1045 = vmatmul.mubr.f32.gmra.mxu0 %v973
    %v1046 = vpop.f32.mrf.mxu0
    %v1047 = vadd.f32 0.0, %v1046
    %v1048 = vpop.f32.mrf.mxu0
    %1049 = vdwg.mxu0
    %v1051 = vsel %vm294, %v1042, 0
    %v1054 = vsel %vm294, %v1047, 0
    %1056 = vmatprep.subr.mxu0 0.0
    %1057 = vmatpush1.msra.mxu0 0.0
    %1058 = vmatprep.subr.mxu0 0.0
    %1059 = vmatpush1.msra.mxu0 0.0
    %1060 = vmatprep.subr.mxu0 0.0
    %1061 = vmatpush1.msra.mxu0 0.0
    %1062 = vmatprep.subr.mxu0 0.0
    %1063 = vmatpush1.msra.mxu0 0.0
    %1064 = vmatprep.subr.mxu0 0.0
    %1065 = vmatpush1.msra.mxu0 0.0
    %1066 = vmatprep.subr.mxu0 0.0
    %1067 = vmatpush1.msra.mxu0 0.0
    %1068 = vmatprep.subr.mxu0 0.0
    %1069 = vmatpush1.msra.mxu0 0.0
    %1070 = vmatprep.subr.mxu0 0.0
    %1071 = vmatpush1.msra.mxu0 0.0
    %1072 = vmatprep.subr.mxu0 0.0
    %1073 = vmatpush1.msra.mxu0 0.0
    %1074 = vmatprep.subr.mxu0 0.0
    %1075 = vmatpush1.msra.mxu0 0.0
    %1076 = vmatprep.subr.mxu0 0.0
    %1077 = vmatpush1.msra.mxu0 0.0
    %1078 = vmatprep.subr.mxu0 0.0
    %1079 = vmatpush1.msra.mxu0 0.0
    %1080 = vmatprep.subr.mxu0 0.0
    %1081 = vmatpush1.msra.mxu0 0.0
    %1082 = vmatprep.subr.mxu0 0.0
    %1083 = vmatpush1.msra.mxu0 0.0
    %1084 = vmatprep.subr.mxu0 0.0
    %1085 = vmatpush1.msra.mxu0 0.0
    %1086 = vmatprep.subr.mxu0 0.0
    %1087 = vmatpush1.msra.mxu0 %v286
    %1088 = vmatprep.subr.mxu0 0.0
    %1089 = vmatpush2.msra.mxu0 0.0
    %1090 = vmatprep.subr.mxu0 0.0
    %1091 = vmatpush2.msra.mxu0 0.0
    %1092 = vmatprep.subr.mxu0 0.0
    %1093 = vmatpush2.msra.mxu0 0.0
    %1094 = vmatprep.subr.mxu0 0.0
    %1095 = vmatpush2.msra.mxu0 0.0
    %1096 = vmatprep.subr.mxu0 0.0
    %1097 = vmatpush2.msra.mxu0 0.0
    %1098 = vmatprep.subr.mxu0 0.0
    %1099 = vmatpush2.msra.mxu0 0.0
    %1100 = vmatprep.subr.mxu0 0.0
    %1101 = vmatpush2.msra.mxu0 0.0
    %1102 = vmatprep.subr.mxu0 0.0
    %1103 = vmatpush2.msra.mxu0 0.0
    %1104 = vmatprep.subr.mxu0 0.0
    %1105 = vmatpush2.msra.mxu0 0.0
    %1106 = vmatprep.subr.mxu0 0.0
    %1107 = vmatpush2.msra.mxu0 0.0
    %1108 = vmatprep.subr.mxu0 0.0
    %1109 = vmatpush2.msra.mxu0 0.0
    %1110 = vmatprep.subr.mxu0 0.0
    %1111 = vmatpush2.msra.mxu0 0.0
    %1112 = vmatprep.subr.mxu0 0.0
    %1113 = vmatpush2.msra.mxu0 0.0
    %1114 = vmatprep.subr.mxu0 0.0
    %1115 = vmatpush2.msra.mxu0 0.0
    %1116 = vmatprep.subr.mxu0 0.0
    %1117 = vmatpush2.msra.mxu0 0.0
    %1118 = vmatprep.subr.mxu0 0.0
    %1119 = vmatpush2.msra.mxu0 0.0
    %1120 = vmatprep.mubr.f32.mxu0 0.0
    %1121 = vmatmul.mubr.f32.gmra.mxu0 %v1051
    %v1122 = vpop.f32.mrf.mxu0
    %v1123 = vadd.f32 0.0, %v1122
    %v1124 = vpop.f32.mrf.mxu0
    %1125 = vmatprep.mubr.f32.mxu0 0.0
    %1126 = vmatmul.mubr.f32.gmra.mxu0 %v1054
    %v1127 = vpop.f32.mrf.mxu0
    %v1128 = vadd.f32 0.0, %v1127
    %v1129 = vpop.f32.mrf.mxu0
    %1130 = vdwg.mxu0
    %v1131 = vadd.f32 %v842, %v1123
    %v1132 = vadd.f32 %v847, %v1128
    %1133 = vrot.lane.b32.xlu0 %v280, 104
    %v1134 = vpop.permute.xlu0 %1133
    %1135 = vrot.lane.b32.xlu0 %v281, 104
    %v1136 = vpop.permute.xlu0 %1135
    %1137 = vrot.lane.b32.xlu0 %v280, 72
    %v1138 = vpop.permute.xlu0 %1137
    %1139 = vrot.lane.b32.xlu0 %v281, 72
    %v1140 = vpop.permute.xlu0 %1139
    %v1141 = vsel %vm294, %v1134, 0
    %v1143 = vsel %vm294, %v1136, 0
    %v1145 = vsel %vm294, %v1138, 0
    %v1147 = vsel %vm294, %v1140, 0
    %1149 = vmatprep.subr.mxu0 0.0
    %1150 = vmatpush1.xpose.msra.mxu0 0.0
    %1151 = vmatprep.subr.mxu0 0.0
    %1152 = vmatpush1.xpose.msra.mxu0 0.0
    %1153 = vmatprep.subr.mxu0 0.0
    %1154 = vmatpush1.xpose.msra.mxu0 0.0
    %1155 = vmatprep.subr.mxu0 0.0
    %1156 = vmatpush1.xpose.msra.mxu0 0.0
    %1157 = vmatprep.subr.mxu0 0.0
    %1158 = vmatpush1.xpose.msra.mxu0 0.0
    %1159 = vmatprep.subr.mxu0 0.0
    %1160 = vmatpush1.xpose.msra.mxu0 0.0
    %1161 = vmatprep.subr.mxu0 0.0
    %1162 = vmatpush1.xpose.msra.mxu0 0.0
    %1163 = vmatprep.subr.mxu0 0.0
    %1164 = vmatpush1.xpose.msra.mxu0 0.0
    %1165 = vmatprep.subr.mxu0 0.0
    %1166 = vmatpush1.xpose.msra.mxu0 0.0
    %1167 = vmatprep.subr.mxu0 0.0
    %1168 = vmatpush1.xpose.msra.mxu0 0.0
    %1169 = vmatprep.subr.mxu0 0.0
    %1170 = vmatpush1.xpose.msra.mxu0 0.0
    %1171 = vmatprep.subr.mxu0 0.0
    %1172 = vmatpush1.xpose.msra.mxu0 0.0
    %1173 = vmatprep.subr.mxu0 0.0
    %1174 = vmatpush1.xpose.msra.mxu0 0.0
    %1175 = vmatprep.subr.mxu0 0.0
    %1176 = vmatpush1.xpose.msra.mxu0 0.0
    %1177 = vmatprep.subr.mxu0 0.0
    %1178 = vmatpush1.xpose.msra.mxu0 %v1147
    %1179 = vmatprep.subr.mxu0 0.0
    %1180 = vmatpush1.xpose.msra.mxu0 %v1145
    %1181 = vmatprep.subr.mxu0 0.0
    %1182 = vmatpush2.xpose.msra.mxu0 0.0
    %1183 = vmatprep.subr.mxu0 0.0
    %1184 = vmatpush2.xpose.msra.mxu0 0.0
    %1185 = vmatprep.subr.mxu0 0.0
    %1186 = vmatpush2.xpose.msra.mxu0 0.0
    %1187 = vmatprep.subr.mxu0 0.0
    %1188 = vmatpush2.xpose.msra.mxu0 0.0
    %1189 = vmatprep.subr.mxu0 0.0
    %1190 = vmatpush2.xpose.msra.mxu0 0.0
    %1191 = vmatprep.subr.mxu0 0.0
    %1192 = vmatpush2.xpose.msra.mxu0 0.0
    %1193 = vmatprep.subr.mxu0 0.0
    %1194 = vmatpush2.xpose.msra.mxu0 0.0
    %1195 = vmatprep.subr.mxu0 0.0
    %1196 = vmatpush2.xpose.msra.mxu0 0.0
    %1197 = vmatprep.subr.mxu0 0.0
    %1198 = vmatpush2.xpose.msra.mxu0 0.0
    %1199 = vmatprep.subr.mxu0 0.0
    %1200 = vmatpush2.xpose.msra.mxu0 0.0
    %1201 = vmatprep.subr.mxu0 0.0
    %1202 = vmatpush2.xpose.msra.mxu0 0.0
    %1203 = vmatprep.subr.mxu0 0.0
    %1204 = vmatpush2.xpose.msra.mxu0 0.0
    %1205 = vmatprep.subr.mxu0 0.0
    %1206 = vmatpush2.xpose.msra.mxu0 0.0
    %1207 = vmatprep.subr.mxu0 0.0
    %1208 = vmatpush2.xpose.msra.mxu0 0.0
    %1209 = vmatprep.subr.mxu0 0.0
    %1210 = vmatpush2.xpose.msra.mxu0 0.0
    %1211 = vmatprep.subr.mxu0 0.0
    %1212 = vmatpush2.xpose.msra.mxu0 0.0
    %1213 = vmatprep.mubr.f32.mxu0 0.0
    %1214 = vmatmul.mubr.f32.gmra.mxu0 %v1141
    %v1215 = vpop.f32.mrf.mxu0
    %v1216 = vadd.f32 %v282, %v1215
    %v1217 = vpop.f32.mrf.mxu0
    %1218 = vmatprep.mubr.f32.mxu0 0.0
    %1219 = vmatmul.mubr.f32.gmra.mxu0 %v1143
    %v1220 = vpop.f32.mrf.mxu0
    %v1221 = vadd.f32 %v283, %v1220
    %v1222 = vpop.f32.mrf.mxu0
    %1223 = vdwg.mxu0
    %v1224 = vsel %vm378, %v1216, -inf
    %1225 = vmax.xlane.f32.xlu0 %v1224
    %v1226 = vpop.xlane.xlu0 %1225
    %v1227 = vsel %vm378, %v1221, -inf
    %1228 = vmax.xlane.f32.xlu0 %v1227
    %v1229 = vpop.xlane.xlu0 %1228
    %v1230 = vsub.f32 %v1216, %v1226
    %v1231 = vsub.f32 %v1221, %v1229
    %v1232 = vmul.f32 %v1230, 1.442695
    %v1233 = vpow.pop %v1232
    %v1234 = vmul.f32 %v1231, 1.442695
    %v1235 = vpow.pop %v1234
    %v1236 = vsel %vm378, %v1233, 0.0
    %1237 = vadd.xlane.f32.xlu0 %v1236
    %v1238 = vpop.xlane.xlu0 %1237
    %v1239 = vsel %vm378, %v1235, 0.0
    %1240 = vadd.xlane.f32.xlu0 %v1239
    %v1241 = vpop.xlane.xlu0 %1240
    %v1242 = vrcp.pop %v1238
    %v1243 = vrcp.pop %v1241
    %v1244 = vmul.f32 %v1233, %v1242
    %v1245 = vmul.f32 %v1235, %v1243
    %1246 = vrot.lane.b32.xlu0 %v280, 40
    %v1247 = vpop.permute.xlu0 %1246
    %1248 = vrot.lane.b32.xlu0 %v281, 40
    %v1249 = vpop.permute.xlu0 %1248
    %v1253 = vsel %vm378, %v1244, 0
    %v1256 = vsel %vm378, %v1245, 0
    %1258 = vmatprep.subr.mxu0 0.0
    %1259 = vmatpush1.msra.mxu0 0.0
    %1260 = vmatprep.subr.mxu0 0.0
    %1261 = vmatpush1.msra.mxu0 0.0
    %1262 = vmatprep.subr.mxu0 0.0
    %1263 = vmatpush1.msra.mxu0 0.0
    %1264 = vmatprep.subr.mxu0 0.0
    %1265 = vmatpush1.msra.mxu0 0.0
    %1266 = vmatprep.subr.mxu0 0.0
    %1267 = vmatpush1.msra.mxu0 0.0
    %1268 = vmatprep.subr.mxu0 0.0
    %1269 = vmatpush1.msra.mxu0 0.0
    %1270 = vmatprep.subr.mxu0 0.0
    %1271 = vmatpush1.msra.mxu0 0.0
    %1272 = vmatprep.subr.mxu0 0.0
    %1273 = vmatpush1.msra.mxu0 0.0
    %1274 = vmatprep.subr.mxu0 0.0
    %1275 = vmatpush1.msra.mxu0 0.0
    %1276 = vmatprep.subr.mxu0 0.0
    %1277 = vmatpush1.msra.mxu0 0.0
    %1278 = vmatprep.subr.mxu0 0.0
    %1279 = vmatpush1.msra.mxu0 0.0
    %1280 = vmatprep.subr.mxu0 0.0
    %1281 = vmatpush1.msra.mxu0 0.0
    %1282 = vmatprep.subr.mxu0 0.0
    %1283 = vmatpush1.msra.mxu0 0.0
    %1284 = vmatprep.subr.mxu0 0.0
    %1285 = vmatpush1.msra.mxu0 0.0
    %1286 = vmatprep.subr.mxu0 0.0
    %1287 = vmatpush1.msra.mxu0 %v1249
    %1288 = vmatprep.subr.mxu0 0.0
    %1289 = vmatpush1.msra.mxu0 %v1247
    %1290 = vmatprep.subr.mxu0 0.0
    %1291 = vmatpush2.msra.mxu0 0.0
    %1292 = vmatprep.subr.mxu0 0.0
    %1293 = vmatpush2.msra.mxu0 0.0
    %1294 = vmatprep.subr.mxu0 0.0
    %1295 = vmatpush2.msra.mxu0 0.0
    %1296 = vmatprep.subr.mxu0 0.0
    %1297 = vmatpush2.msra.mxu0 0.0
    %1298 = vmatprep.subr.mxu0 0.0
    %1299 = vmatpush2.msra.mxu0 0.0
    %1300 = vmatprep.subr.mxu0 0.0
    %1301 = vmatpush2.msra.mxu0 0.0
    %1302 = vmatprep.subr.mxu0 0.0
    %1303 = vmatpush2.msra.mxu0 0.0
    %1304 = vmatprep.subr.mxu0 0.0
    %1305 = vmatpush2.msra.mxu0 0.0
    %1306 = vmatprep.subr.mxu0 0.0
    %1307 = vmatpush2.msra.mxu0 0.0
    %1308 = vmatprep.subr.mxu0 0.0
    %1309 = vmatpush2.msra.mxu0 0.0
    %1310 = vmatprep.subr.mxu0 0.0
    %1311 = vmatpush2.msra.mxu0 0.0
    %1312 = vmatprep.subr.mxu0 0.0
    %1313 = vmatpush2.msra.mxu0 0.0
    %1314 = vmatprep.subr.mxu0 0.0
    %1315 = vmatpush2.msra.mxu0 0.0
    %1316 = vmatprep.subr.mxu0 0.0
    %1317 = vmatpush2.msra.mxu0 0.0
    %1318 = vmatprep.subr.mxu0 0.0
    %1319 = vmatpush2.msra.mxu0 0.0
    %1320 = vmatprep.subr.mxu0 0.0
    %1321 = vmatpush2.msra.mxu0 0.0
    %1322 = vmatprep.mubr.f32.mxu0 0.0
    %1323 = vmatmul.mubr.f32.gmra.mxu0 %v1253
    %v1324 = vpop.f32.mrf.mxu0
    %v1325 = vadd.f32 0.0, %v1324
    %v1326 = vpop.f32.mrf.mxu0
    %1327 = vmatprep.mubr.f32.mxu0 0.0
    %1328 = vmatmul.mubr.f32.gmra.mxu0 %v1256
    %v1329 = vpop.f32.mrf.mxu0
    %v1330 = vadd.f32 0.0, %v1329
    %v1331 = vpop.f32.mrf.mxu0
    %1332 = vdwg.mxu0
    %v1334 = vsel %vm294, %v1325, 0
    %v1337 = vsel %vm294, %v1330, 0
    %1339 = vmatprep.subr.mxu0 0.0
    %1340 = vmatpush1.msra.mxu0 0.0
    %1341 = vmatprep.subr.mxu0 0.0
    %1342 = vmatpush1.msra.mxu0 0.0
    %1343 = vmatprep.subr.mxu0 0.0
    %1344 = vmatpush1.msra.mxu0 0.0
    %1345 = vmatprep.subr.mxu0 0.0
    %1346 = vmatpush1.msra.mxu0 0.0
    %1347 = vmatprep.subr.mxu0 0.0
    %1348 = vmatpush1.msra.mxu0 0.0
    %1349 = vmatprep.subr.mxu0 0.0
    %1350 = vmatpush1.msra.mxu0 0.0
    %1351 = vmatprep.subr.mxu0 0.0
    %1352 = vmatpush1.msra.mxu0 0.0
    %1353 = vmatprep.subr.mxu0 0.0
    %1354 = vmatpush1.msra.mxu0 0.0
    %1355 = vmatprep.subr.mxu0 0.0
    %1356 = vmatpush1.msra.mxu0 0.0
    %1357 = vmatprep.subr.mxu0 0.0
    %1358 = vmatpush1.msra.mxu0 0.0
    %1359 = vmatprep.subr.mxu0 0.0
    %1360 = vmatpush1.msra.mxu0 0.0
    %1361 = vmatprep.subr.mxu0 0.0
    %1362 = vmatpush1.msra.mxu0 0.0
    %1363 = vmatprep.subr.mxu0 0.0
    %1364 = vmatpush1.msra.mxu0 0.0
    %1365 = vmatprep.subr.mxu0 0.0
    %1366 = vmatpush1.msra.mxu0 0.0
    %1367 = vmatprep.subr.mxu0 0.0
    %1368 = vmatpush1.msra.mxu0 0.0
    %1369 = vmatprep.subr.mxu0 0.0
    %1370 = vmatpush1.msra.mxu0 %v287
    %1371 = vmatprep.subr.mxu0 0.0
    %1372 = vmatpush2.msra.mxu0 0.0
    %1373 = vmatprep.subr.mxu0 0.0
    %1374 = vmatpush2.msra.mxu0 0.0
    %1375 = vmatprep.subr.mxu0 0.0
    %1376 = vmatpush2.msra.mxu0 0.0
    %1377 = vmatprep.subr.mxu0 0.0
    %1378 = vmatpush2.msra.mxu0 0.0
    %1379 = vmatprep.subr.mxu0 0.0
    %1380 = vmatpush2.msra.mxu0 0.0
    %1381 = vmatprep.subr.mxu0 0.0
    %1382 = vmatpush2.msra.mxu0 0.0
    %1383 = vmatprep.subr.mxu0 0.0
    %1384 = vmatpush2.msra.mxu0 0.0
    %1385 = vmatprep.subr.mxu0 0.0
    %1386 = vmatpush2.msra.mxu0 0.0
    %1387 = vmatprep.subr.mxu0 0.0
    %1388 = vmatpush2.msra.mxu0 0.0
    %1389 = vmatprep.subr.mxu0 0.0
    %1390 = vmatpush2.msra.mxu0 0.0
    %1391 = vmatprep.subr.mxu0 0.0
    %1392 = vmatpush2.msra.mxu0 0.0
    %1393 = vmatprep.subr.mxu0 0.0
    %1394 = vmatpush2.msra.mxu0 0.0
    %1395 = vmatprep.subr.mxu0 0.0
    %1396 = vmatpush2.msra.mxu0 0.0
    %1397 = vmatprep.subr.mxu0 0.0
    %1398 = vmatpush2.msra.mxu0 0.0
    %1399 = vmatprep.subr.mxu0 0.0
    %1400 = vmatpush2.msra.mxu0 0.0
    %1401 = vmatprep.subr.mxu0 0.0
    %1402 = vmatpush2.msra.mxu0 0.0
    %1403 = vmatprep.mubr.f32.mxu0 0.0
    %1404 = vmatmul.mubr.f32.gmra.mxu0 %v1334
    %v1405 = vpop.f32.mrf.mxu0
    %v1406 = vadd.f32 0.0, %v1405
    %v1407 = vpop.f32.mrf.mxu0
    %1408 = vmatprep.mubr.f32.mxu0 0.0
    %1409 = vmatmul.mubr.f32.gmra.mxu0 %v1337
    %v1410 = vpop.f32.mrf.mxu0
    %v1411 = vadd.f32 0.0, %v1410
    %v1412 = vpop.f32.mrf.mxu0
    %1413 = vdwg.mxu0
    %v1414 = vadd.f32 %v1131, %v1406
    %v1415 = vadd.f32 %v1132, %v1411
    %1416 = vst.msk [vmem:[#allocation14] sm:$0xff] %vm128, %v1414
    %1417 = vst.msk [vmem:[#allocation14 + $0x8] sm:$0xff] %vm128, %v1415
    // Predicated region
    $region58: #{tpu_custom_call.1} parent=1 // pred_check
      _
    $region59: #{tpu_custom_call.1} parent=1 // pred_check_branch
      %1419 = sbr.rel (0) target = $region61
    $region60: #{tpu_custom_call.1} parent=1 // pred_region
      %s1421 = ssub.s32 256, 256
      %1422 = vsyncadd [#allocation4], %s1421
      %s1423 = sshll.u32 [#allocation14], 4
      %s1424 = int_to_ptr.vmem [resolvable:$true] %s1423
      %1429 = dma.vmem_to_hbm [thread:$0]  %s1424, 256, %s7, [#allocation4], 128, 128, 8
    $region61: #{tpu_custom_call.1} parent=1 // pred_fallthru
      _
    // Predicated region
    $region62: #{tpu_custom_call.1} parent=1 // pred_check
      _
    $region63: #{tpu_custom_call.1} parent=1 // pred_check_branch
      %1431 = sbr.rel (0) target = $region65
    $region64: #{tpu_custom_call.1} parent=1 // pred_region
      %1432 = dma.done [#allocation4], 256
    $region65: #{tpu_custom_call.1} parent=1 // pred_fallthru
      _
    %1433 = vsyncpa [#allocation3], 1
    %1434 = vsyncpa [#allocation6], 1
    %1435 = vsyncpa [#allocation9], 1
    %1436 = vsyncpa [#allocation12], 1
    %1437 = vsyncpa [#allocation4], 1

</llo_original>
